<compile_context>
chip_gen: v7x
topology: tpu7x:2x2x1
jax: 0.10.0
libtpu: 0.0.40
codegen_flags: <defaults>
</compile_context>

<pallas_src>
import functools
import math

import jax
import jax.numpy as jnp
from jax import lax
from jax.experimental import pallas as pl
from jax.experimental.pallas import tpu as pltpu


def _layernorm(h, w, b, eps=1e-5):
    mu = jnp.mean(h, axis=-1, keepdims=True)
    var = jnp.mean((h - mu) ** 2, axis=-1, keepdims=True)
    return (h - mu) * lax.rsqrt(var + eps) * w + b


def transformer_block_kernel(
    x_ref,                      # (1, T, D)  f32 (resident per batch element)
    ln1w_ref, ln1b_ref,         # (1, D) f32
    wqkv_ref, bqkv_ref,         # (D, 3D) bf16, (1, 3D) f32
    wo_ref, bo_ref,             # (D, D) bf16, (1, D) f32
    ln2w_ref, ln2b_ref,         # (1, D) f32
    w1_ref, b1_ref,             # (D, 4D) bf16, (1, 4D) f32
    w2_ref, b2_ref,             # (4D, D) bf16, (1, D) f32
    o_ref,                      # (1, TQ, D)
    q_s, k_s, v_s,              # scratch (H, T, hd[+1]) bf16, persist across tiles
    *, n_heads, tq, tk, ck, scale, fuse_lsum,
):
    T, D = x_ref.shape[1], x_ref.shape[2]
    hd = D // n_heads
    qi = pl.program_id(1)
    bf16 = jnp.bfloat16

    # ---- once per batch element: ln1 + fused QKV projection, chunked over T ----
    @pl.when(qi == 0)
    def _():
        ones_ck = jnp.ones((ck, 1), jnp.float32)

        def build(ci, carry):
            r0 = pl.multiple_of(ci * ck, ck)
            xf = x_ref[0, pl.ds(r0, ck), :]                            # (ck, D) f32
            h1 = _layernorm(xf, ln1w_ref[...], ln1b_ref[...])
            qkv = jnp.dot(h1.astype(bf16), wqkv_ref[...],
                          preferred_element_type=jnp.float32) + bqkv_ref[...]
            for h in range(n_heads):                                   # head-major cache
                qh = qkv[:, h * hd:(h + 1) * hd] * scale               # f32 scale
                kh = qkv[:, D + h * hd:D + (h + 1) * hd]
                vh = qkv[:, 2 * D + h * hd:2 * D + (h + 1) * hd]
                if fuse_lsum:                                          # bake ones column
                    vh = jnp.concatenate([vh, ones_ck], axis=-1)
                q_s[h, pl.ds(r0, ck), :] = qh.astype(bf16)
                k_s[h, pl.ds(r0, ck), :] = kh.astype(bf16)
                v_s[h, pl.ds(r0, ck), :] = vh.astype(bf16)
            return carry

        lax.fori_loop(0, T // ck, build, 0)

    # ---- attention for this query tile: online softmax over KV chunks ----
    row0 = pl.multiple_of(qi * tq, tq)
    q_t = q_s[:, pl.ds(row0, tq), :]                                   # (H, TQ, hd) bf16

    nk = T // tk
    m0 = jnp.full((n_heads, tq, 1), -jnp.inf, jnp.float32)
    l0 = jnp.zeros((n_heads, tq, 1), jnp.float32)
    a0 = jnp.zeros((n_heads, tq, hd), jnp.float32)

    def kv_step(kv, carry):
        m, l, acc = carry
        c0 = pl.multiple_of(kv * tk, tk)
        k_c = k_s[:, pl.ds(c0, tk), :]                                 # (H, TK, hd)
        v_c = v_s[:, pl.ds(c0, tk), :]                                 # (H, TK, hd[+1])
        s = jnp.einsum('hqd,hkd->hqk', q_t, k_c,
                       preferred_element_type=jnp.float32)             # (H, TQ, TK) f32
        # NOTE: no causal mask (the masked_fill result is discarded in the reference)
        m_new = jnp.maximum(m, s.max(axis=-1, keepdims=True))
        alpha = jnp.exp(m - m_new)
        p = jnp.exp(s - m_new)
        pv = jnp.einsum('hqk,hkd->hqd', p.astype(bf16), v_c,
                        preferred_element_type=jnp.float32)
        if fuse_lsum:
            # last column of V is ones -> the PV matmul also produced the row sum
            l_new = alpha * l + pv[..., hd:hd + 1]
            acc_new = alpha * acc + pv[..., :hd]
        else:
            l_new = alpha * l + p.sum(axis=-1, keepdims=True)
            acc_new = alpha * acc + pv
        return m_new, l_new, acc_new

    m, l, acc = lax.fori_loop(0, nk, kv_step, (m0, l0, a0),
                              unroll=2 if nk % 2 == 0 else 1)

    inv_l = pl.reciprocal(l, approx=True)                              # (H, TQ, 1) f32
    x_t = x_ref[0, pl.ds(row0, tq), :]                                 # (TQ, D) f32

    # out-projection accumulated per head (no (TQ, D) scratch / masked stores)
    att = jnp.zeros((tq, D), jnp.float32)
    for h in range(n_heads):
        ph = (acc[h] * inv_l[h]).astype(bf16)                          # (TQ, hd)
        att = att + jnp.dot(ph, wo_ref[h * hd:(h + 1) * hd, :],
                            preferred_element_type=jnp.float32)
    att = att + bo_ref[...]
    h2 = x_t + att

    # ---- ln2 + MLP on the tile ----
    h3 = _layernorm(h2, ln2w_ref[...], ln2b_ref[...])
    mh = jnp.dot(h3.astype(bf16), w1_ref[...],
                 preferred_element_type=jnp.float32) + b1_ref[...]
    mh = jnp.maximum(mh, 0.0)
    mlp = jnp.dot(mh.astype(bf16), w2_ref[...],
                  preferred_element_type=jnp.float32) + b2_ref[...]

    # second residual uses the ORIGINAL x, exactly as in the reference forward()
    o_ref[0] = (x_t + mlp).astype(o_ref.dtype)


def _pick_tile(total, target):
    """Largest multiple-of-8 divisor of `total` that is <= target (or `total`)."""
    if total <= target:
        return total
    for c in range(target, 7, -1):
        if total % c == 0 and c % 8 == 0:
            return c
    return total


def transformer_block(x, params, n_heads, *, tq=None, tk=None):
    B, T, D = x.shape
    assert D % n_heads == 0
    hd = D // n_heads

    tq = tq or _pick_tile(T, 256)     # query tile
    tk = tk or _pick_tile(T, 512)     # kv chunk (consider 256 on v7x's 64 MiB VMEM)
    ck = _pick_tile(T, 256)           # chunk for the once-per-batch ln1+QKV build
    nq = T // tq

    # Fuse the softmax row-sum into the PV matmul (ones column in the V cache)
    # whenever hd is not already a multiple of 128 -- then the column is free
    # under lane padding.  Otherwise keep p.sum to avoid doubling the V cache.
    fuse_lsum = (hd % 128) != 0
    vd = hd + 1 if fuse_lsum else hd

    f32, bf16 = jnp.float32, jnp.bfloat16
    param_list = [
        params['ln1w'].astype(f32), params['ln1b'].astype(f32),
        params['wqkv'].astype(bf16), params['bqkv'].astype(f32),
        params['wo'].astype(bf16), params['bo'].astype(f32),
        params['ln2w'].astype(f32), params['ln2b'].astype(f32),
        params['w1'].astype(bf16), params['b1'].astype(f32),
        params['w2'].astype(bf16), params['b2'].astype(f32),
    ]

    x_spec = pl.BlockSpec((1, T, D), lambda b, q: (b, 0, 0))
    w_specs = [pl.BlockSpec(p.shape, lambda b, q: (0, 0)) for p in param_list]
    out_spec = pl.BlockSpec((1, tq, D), lambda b, q: (b, q, 0))

    kernel = functools.partial(
        transformer_block_kernel, n_heads=n_heads, tq=tq, tk=tk, ck=ck,
        scale=1.0 / math.sqrt(hd), fuse_lsum=fuse_lsum)

    # Rough VMEM / cost bookkeeping.
    hd_pad = -(-hd // 128) * 128
    weight_bytes = sum(int(p.size) * p.dtype.itemsize for p in param_list)
    scratch_bytes = 3 * n_heads * T * hd_pad * 2
    act_bytes = (2 * 4 * T * D                          # resident x block (dbl buf)
                 + 2 * 4 * tq * D                       # out tile (dbl buf)
                 + 4 * ck * 3 * D                       # chunked qkv temporary (f32)
                 + 4 * n_heads * tq * (tk + 2 * hd_pad) # scores + acc
                 + 4 * tq * 4 * D)                      # MLP hidden (f32)
    need = 2 * weight_bytes + scratch_bytes + act_bytes

    try:
        phys = int(getattr(pltpu.get_tpu_info(), "vmem_capacity_bytes",
                           64 * 1024 * 1024))
    except Exception:
        phys = 64 * 1024 * 1024
    vmem_cap = max(32 * 1024 * 1024, phys - 16 * 1024 * 1024)
    vmem_limit = int(min(max(1.5 * need, 32 * 1024 * 1024), vmem_cap))

    cost = pl.CostEstimate(
        flops=int(B * (24 * T * D * D + 4 * T * T * D)),
        transcendentals=int(B * (n_heads * T * T + 2 * T * D)),
        bytes_accessed=int(2 * B * T * D * 4 + weight_bytes),
    )

    return pl.pallas_call(
        kernel,
        out_shape=jax.ShapeDtypeStruct((B, T, D), x.dtype),
        grid=(B, nq),
        in_specs=[x_spec] + w_specs,
        out_specs=out_spec,
        scratch_shapes=[
            pltpu.VMEM((n_heads, T, hd), jnp.bfloat16),   # Q cache (head-major)
            pltpu.VMEM((n_heads, T, hd), jnp.bfloat16),   # K cache
            pltpu.VMEM((n_heads, T, vd), jnp.bfloat16),   # V cache (+ ones column)
        ],
        compiler_params=pltpu.CompilerParams(
            dimension_semantics=("parallel", "arbitrary"),
            vmem_limit_bytes=vmem_limit,
        ),
        cost_estimate=cost,
    )(x, *param_list)


# ---------------- pure-JAX f32 reference (mirrors the PyTorch forward) ----------
def reference_block(x, params, n_heads):
    def ln(h, w, b, eps=1e-5):
        mu = h.mean(-1, keepdims=True)
        var = ((h - mu) ** 2).mean(-1, keepdims=True)
        return (h - mu) / jnp.sqrt(var + eps) * w + b

    B, T, D = x.shape
    hd = D // n_heads
    h = ln(x, params['ln1w'], params['ln1b'])
    qkv = h @ params['wqkv'] + params['bqkv']
    q, k, v = qkv[..., :D], qkv[..., D:2 * D], qkv[..., 2 * D:]
    q = q.reshape(B, T, n_heads, hd).transpose(0, 2, 1, 3)
    k = k.reshape(B, T, n_heads, hd).transpose(0, 2, 1, 3)
    v = v.reshape(B, T, n_heads, hd).transpose(0, 2, 1, 3)
    s = jnp.einsum('bhqd,bhkd->bhqk', q, k) / math.sqrt(hd)
    # masked_fill in the PyTorch code is out-of-place & discarded -> no mask
    p = jax.nn.softmax(s, axis=-1)
    att = jnp.einsum('bhqk,bhkd->bhqd', p, v)
    att = att.transpose(0, 2, 1, 3).reshape(B, T, D)
    att = att @ params['wo'] + params['bo']
    h2 = x + att
    h3 = ln(h2, params['ln2w'], params['ln2b'])
    m = jnp.maximum(h3 @ params['w1'] + params['b1'], 0.0)
    return x + (m @ params['w2'] + params['b2'])


def init_params(key, dim):
    ks = jax.random.split(key, 8)

    def lin(k, fan_in, fan_out):
        s = 1.0 / math.sqrt(fan_in)
        w = jax.random.uniform(k, (fan_in, fan_out), jnp.float32, -s, s)
        b = jax.random.uniform(jax.random.fold_in(k, 1), (1, fan_out),
                               jnp.float32, -s, s)
        return w, b

    wqkv, bqkv = lin(ks[0], dim, 3 * dim)
    wo, bo = lin(ks[1], dim, dim)
    w1, b1 = lin(ks[2], dim, 4 * dim)
    w2, b2 = lin(ks[3], 4 * dim, dim)
    return {
        'ln1w': jnp.ones((1, dim), jnp.float32)
                + 0.02 * jax.random.normal(ks[4], (1, dim)),
        'ln1b': 0.02 * jax.random.normal(ks[5], (1, dim)),
        'ln2w': jnp.ones((1, dim), jnp.float32)
                + 0.02 * jax.random.normal(ks[6], (1, dim)),
        'ln2b': 0.02 * jax.random.normal(ks[7], (1, dim)),
        'wqkv': wqkv, 'bqkv': bqkv, 'wo': wo, 'bo': bo,
        'w1': w1, 'b1': b1, 'w2': w2, 'b2': b2,
    }


if __name__ == "__main__":
    B, T, D, H = 2, 8, 32, 4          # dim % n_heads == 0

    key = jax.random.PRNGKey(0)
    kx, kp = jax.random.split(key)
    x = jax.random.normal(kx, (B, T, D), jnp.float32)
    params = init_params(kp, D)

    out = jax.block_until_ready(transformer_block(x, params, n_heads=H))
    ref = reference_block(x, params, n_heads=H)

    assert out.shape == (B, T, D)
    # bf16 matmul operands + approx reciprocal vs f32 reference -> loose tolerance
    err = float(jnp.max(jnp.abs(out - ref)))
    assert err < 1e-1, err

    print("KERNEL_OK")
</pallas_src>

<mosaic_0001>
module attributes {stable_mosaic.version = 11 : i64} {
  func.func @transformer_block_kernel(%arg0: i32, %arg1: i32, %arg2: memref<1x8x32xf32, #tpu.memory_space<vmem>>, %arg3: memref<1x32xf32, #tpu.memory_space<vmem>>, %arg4: memref<1x32xf32, #tpu.memory_space<vmem>>, %arg5: memref<32x96xbf16, #tpu.memory_space<vmem>>, %arg6: memref<1x96xf32, #tpu.memory_space<vmem>>, %arg7: memref<32x32xbf16, #tpu.memory_space<vmem>>, %arg8: memref<1x32xf32, #tpu.memory_space<vmem>>, %arg9: memref<1x32xf32, #tpu.memory_space<vmem>>, %arg10: memref<1x32xf32, #tpu.memory_space<vmem>>, %arg11: memref<32x128xbf16, #tpu.memory_space<vmem>>, %arg12: memref<1x128xf32, #tpu.memory_space<vmem>>, %arg13: memref<128x32xbf16, #tpu.memory_space<vmem>>, %arg14: memref<1x32xf32, #tpu.memory_space<vmem>>, %arg15: memref<1x8x32xf32, #tpu.memory_space<vmem>>, %arg16: memref<4x8x8xbf16, #tpu.memory_space<vmem>>, %arg17: memref<4x8x8xbf16, #tpu.memory_space<vmem>>, %arg18: memref<4x8x9xbf16, #tpu.memory_space<vmem>>) attributes {dimension_semantics = [#tpu.dimension_semantics<parallel>, #tpu.dimension_semantics<arbitrary>], iteration_bounds = array<i64: 2, 1>, scalar_prefetch = 0 : i64, scratch_operands = 3 : i64, tpu.core_type = #tpu.core_type<tc>, window_params = [{transform_indices = @transform_0, window_bounds = array<i64: 1, 8, 32>}, {pipeline_mode = #tpu.pipeline_mode<synchronous>, transform_indices = @transform_1, window_bounds = array<i64: 1, 32>}, {pipeline_mode = #tpu.pipeline_mode<synchronous>, transform_indices = @transform_2, window_bounds = array<i64: 1, 32>}, {pipeline_mode = #tpu.pipeline_mode<synchronous>, transform_indices = @transform_3, window_bounds = array<i64: 32, 96>}, {pipeline_mode = #tpu.pipeline_mode<synchronous>, transform_indices = @transform_4, window_bounds = array<i64: 1, 96>}, {pipeline_mode = #tpu.pipeline_mode<synchronous>, transform_indices = @transform_5, window_bounds = array<i64: 32, 32>}, {pipeline_mode = #tpu.pipeline_mode<synchronous>, transform_indices = @transform_6, window_bounds = array<i64: 1, 32>}, {pipeline_mode = #tpu.pipeline_mode<synchronous>, transform_indices = @transform_7, window_bounds = array<i64: 1, 32>}, {pipeline_mode = #tpu.pipeline_mode<synchronous>, transform_indices = @transform_8, window_bounds = array<i64: 1, 32>}, {pipeline_mode = #tpu.pipeline_mode<synchronous>, transform_indices = @transform_9, window_bounds = array<i64: 32, 128>}, {pipeline_mode = #tpu.pipeline_mode<synchronous>, transform_indices = @transform_10, window_bounds = array<i64: 1, 128>}, {pipeline_mode = #tpu.pipeline_mode<synchronous>, transform_indices = @transform_11, window_bounds = array<i64: 128, 32>}, {pipeline_mode = #tpu.pipeline_mode<synchronous>, transform_indices = @transform_12, window_bounds = array<i64: 1, 32>}, {transform_indices = @transform_13, window_bounds = array<i64: 1, 8, 32>}]} {
    %c0_i32 = arith.constant 0 : i32
    %0 = arith.cmpi eq, %arg1, %c0_i32 : i32
    %1 = arith.extui %0 : i1 to i32
    %c0_i32_0 = arith.constant 0 : i32
    %2 = arith.cmpi ne, %1, %c0_i32_0 : i32
    scf.if %2 {
      %cst_50 = arith.constant 1.000000e+00 : f32
      %125 = vector.broadcast %cst_50 : f32 to vector<8x1xf32>
      %c0_i32_51 = arith.constant 0 : i32
      %c8_i32_52 = arith.constant 8 : i32
      %126 = arith.muli %c0_i32_51, %c8_i32_52 : i32
      %127 = tpu.assume_multiple %126, 8 : i32
      %c0_53 = arith.constant 0 : index
      %128 = arith.index_cast %127 : i32 to index
      %c0_54 = arith.constant 0 : index
      %129 = vector.load %arg2[%c0_53, %128, %c0_54] : memref<1x8x32xf32, #tpu.memory_space<vmem>>, vector<1x8x32xf32>
      %130 = vector.shape_cast %129 : vector<1x8x32xf32> to vector<8x32xf32>
      %c0_55 = arith.constant 0 : index
      %c0_56 = arith.constant 0 : index
      %131 = vector.load %arg3[%c0_55, %c0_56] : memref<1x32xf32, #tpu.memory_space<vmem>>, vector<1x32xf32>
      %c0_57 = arith.constant 0 : index
      %c0_58 = arith.constant 0 : index
      %132 = vector.load %arg4[%c0_57, %c0_58] : memref<1x32xf32, #tpu.memory_space<vmem>>, vector<1x32xf32>
      %cst_59 = arith.constant dense<0.000000e+00> : vector<8xf32>
      %133 = vector.multi_reduction <add>, %130, %cst_59 [1] : vector<8x32xf32> to vector<8xf32>
      %134 = vector.shape_cast %133 : vector<8xf32> to vector<8x1xf32>
      %cst_60 = arith.constant 3.200000e+01 : f32
      %135 = vector.broadcast %cst_60 : f32 to vector<8x1xf32>
      %136 = arith.divf %134, %135 : vector<8x1xf32>
      %137 = vector.broadcast %136 : vector<8x1xf32> to vector<8x32xf32>
      %138 = arith.subf %130, %137 : vector<8x32xf32>
      %139 = arith.mulf %138, %138 : vector<8x32xf32>
      %cst_61 = arith.constant dense<0.000000e+00> : vector<8xf32>
      %140 = vector.multi_reduction <add>, %139, %cst_61 [1] : vector<8x32xf32> to vector<8xf32>
      %141 = vector.shape_cast %140 : vector<8xf32> to vector<8x1xf32>
      %cst_62 = arith.constant 3.200000e+01 : f32
      %142 = vector.broadcast %cst_62 : f32 to vector<8x1xf32>
      %143 = arith.divf %141, %142 : vector<8x1xf32>
      %144 = vector.broadcast %136 : vector<8x1xf32> to vector<8x32xf32>
      %145 = arith.subf %130, %144 : vector<8x32xf32>
      %cst_63 = arith.constant 9.99999974E-6 : f32
      %146 = vector.broadcast %cst_63 : f32 to vector<8x1xf32>
      %147 = arith.addf %143, %146 : vector<8x1xf32>
      %148 = math.rsqrt %147 : vector<8x1xf32>
      %149 = vector.broadcast %148 : vector<8x1xf32> to vector<8x32xf32>
      %150 = arith.mulf %145, %149 : vector<8x32xf32>
      %151 = vector.broadcast %131 : vector<1x32xf32> to vector<8x32xf32>
      %152 = arith.mulf %150, %151 : vector<8x32xf32>
      %153 = vector.broadcast %132 : vector<1x32xf32> to vector<8x32xf32>
      %154 = arith.addf %152, %153 : vector<8x32xf32>
      %155 = arith.truncf %154 : vector<8x32xf32> to vector<8x32xbf16>
      %c0_64 = arith.constant 0 : index
      %c0_65 = arith.constant 0 : index
      %156 = vector.load %arg5[%c0_64, %c0_65] : memref<32x96xbf16, #tpu.memory_space<vmem>>, vector<32x96xbf16>
      %cst_66 = arith.constant dense<0.000000e+00> : vector<8x96xf32>
      %157 = tpu.matmul %155, %156, %cst_66 {dimension_numbers = #tpu.dot_dimension_numbers<[1], [0], [0], [1], [0, 0, 1, 1], [], []>} : vector<8x32xbf16>, vector<32x96xbf16>, vector<8x96xf32> -> vector<8x96xf32>
      %c0_67 = arith.constant 0 : index
      %c0_68 = arith.constant 0 : index
      %158 = vector.load %arg6[%c0_67, %c0_68] : memref<1x96xf32, #tpu.memory_space<vmem>>, vector<1x96xf32>
      %159 = vector.broadcast %158 : vector<1x96xf32> to vector<8x96xf32>
      %160 = arith.addf %157, %159 : vector<8x96xf32>
      %161 = vector.extract_strided_slice %160 {offsets = [0, 0], sizes = [8, 8], strides = [1, 1]} : vector<8x96xf32> to vector<8x8xf32>
      %cst_69 = arith.constant 0.353553385 : f32
      %162 = vector.broadcast %cst_69 : f32 to vector<8x8xf32>
      %163 = arith.mulf %161, %162 : vector<8x8xf32>
      %164 = vector.extract_strided_slice %160 {offsets = [0, 32], sizes = [8, 8], strides = [1, 1]} : vector<8x96xf32> to vector<8x8xf32>
      %165 = vector.extract_strided_slice %160 {offsets = [0, 64], sizes = [8, 8], strides = [1, 1]} : vector<8x96xf32> to vector<8x8xf32>
      %166 = tpu.concatenate %165, %125 in 1 : vector<8x8xf32>, vector<8x1xf32> -> vector<8x9xf32>
      %167 = arith.truncf %163 : vector<8x8xf32> to vector<8x8xbf16>
      %c0_70 = arith.constant 0 : index
      %168 = arith.index_cast %127 : i32 to index
      %c0_71 = arith.constant 0 : index
      %169 = vector.load %arg16[%c0_70, %168, %c0_71] : memref<4x8x8xbf16, #tpu.memory_space<vmem>>, vector<1x8x8xbf16>
      %170 = vector.shape_cast %169 : vector<1x8x8xbf16> to vector<8x8xbf16>
      %171 = vector.shape_cast %167 : vector<8x8xbf16> to vector<1x8x8xbf16>
      tpu.vector_store %arg16[%c0_70, %168, %c0_71], %171 {strides = array<i32>} : memref<4x8x8xbf16, #tpu.memory_space<vmem>>, vector<1x8x8xbf16>,
      %172 = arith.truncf %164 : vector<8x8xf32> to vector<8x8xbf16>
      %c0_72 = arith.constant 0 : index
      %173 = arith.index_cast %127 : i32 to index
      %c0_73 = arith.constant 0 : index
      %174 = vector.load %arg17[%c0_72, %173, %c0_73] : memref<4x8x8xbf16, #tpu.memory_space<vmem>>, vector<1x8x8xbf16>
      %175 = vector.shape_cast %174 : vector<1x8x8xbf16> to vector<8x8xbf16>
      %176 = vector.shape_cast %172 : vector<8x8xbf16> to vector<1x8x8xbf16>
      tpu.vector_store %arg17[%c0_72, %173, %c0_73], %176 {strides = array<i32>} : memref<4x8x8xbf16, #tpu.memory_space<vmem>>, vector<1x8x8xbf16>,
      %177 = arith.truncf %166 : vector<8x9xf32> to vector<8x9xbf16>
      %c0_74 = arith.constant 0 : index
      %178 = arith.index_cast %127 : i32 to index
      %c0_75 = arith.constant 0 : index
      %179 = vector.load %arg18[%c0_74, %178, %c0_75] : memref<4x8x9xbf16, #tpu.memory_space<vmem>>, vector<1x8x9xbf16>
      %180 = vector.shape_cast %179 : vector<1x8x9xbf16> to vector<8x9xbf16>
      %181 = vector.shape_cast %177 : vector<8x9xbf16> to vector<1x8x9xbf16>
      tpu.vector_store %arg18[%c0_74, %178, %c0_75], %181 {strides = array<i32>} : memref<4x8x9xbf16, #tpu.memory_space<vmem>>, vector<1x8x9xbf16>,
      %182 = vector.extract_strided_slice %160 {offsets = [0, 8], sizes = [8, 8], strides = [1, 1]} : vector<8x96xf32> to vector<8x8xf32>
      %cst_76 = arith.constant 0.353553385 : f32
      %183 = vector.broadcast %cst_76 : f32 to vector<8x8xf32>
      %184 = arith.mulf %182, %183 : vector<8x8xf32>
      %185 = vector.extract_strided_slice %160 {offsets = [0, 40], sizes = [8, 8], strides = [1, 1]} : vector<8x96xf32> to vector<8x8xf32>
      %186 = vector.extract_strided_slice %160 {offsets = [0, 72], sizes = [8, 8], strides = [1, 1]} : vector<8x96xf32> to vector<8x8xf32>
      %187 = tpu.concatenate %186, %125 in 1 : vector<8x8xf32>, vector<8x1xf32> -> vector<8x9xf32>
      %188 = arith.truncf %184 : vector<8x8xf32> to vector<8x8xbf16>
      %c1 = arith.constant 1 : index
      %189 = arith.index_cast %127 : i32 to index
      %c0_77 = arith.constant 0 : index
      %190 = vector.load %arg16[%c1, %189, %c0_77] : memref<4x8x8xbf16, #tpu.memory_space<vmem>>, vector<1x8x8xbf16>
      %191 = vector.shape_cast %190 : vector<1x8x8xbf16> to vector<8x8xbf16>
      %192 = vector.shape_cast %188 : vector<8x8xbf16> to vector<1x8x8xbf16>
      tpu.vector_store %arg16[%c1, %189, %c0_77], %192 {strides = array<i32>} : memref<4x8x8xbf16, #tpu.memory_space<vmem>>, vector<1x8x8xbf16>,
      %193 = arith.truncf %185 : vector<8x8xf32> to vector<8x8xbf16>
      %c1_78 = arith.constant 1 : index
      %194 = arith.index_cast %127 : i32 to index
      %c0_79 = arith.constant 0 : index
      %195 = vector.load %arg17[%c1_78, %194, %c0_79] : memref<4x8x8xbf16, #tpu.memory_space<vmem>>, vector<1x8x8xbf16>
      %196 = vector.shape_cast %195 : vector<1x8x8xbf16> to vector<8x8xbf16>
      %197 = vector.shape_cast %193 : vector<8x8xbf16> to vector<1x8x8xbf16>
      tpu.vector_store %arg17[%c1_78, %194, %c0_79], %197 {strides = array<i32>} : memref<4x8x8xbf16, #tpu.memory_space<vmem>>, vector<1x8x8xbf16>,
      %198 = arith.truncf %187 : vector<8x9xf32> to vector<8x9xbf16>
      %c1_80 = arith.constant 1 : index
      %199 = arith.index_cast %127 : i32 to index
      %c0_81 = arith.constant 0 : index
      %200 = vector.load %arg18[%c1_80, %199, %c0_81] : memref<4x8x9xbf16, #tpu.memory_space<vmem>>, vector<1x8x9xbf16>
      %201 = vector.shape_cast %200 : vector<1x8x9xbf16> to vector<8x9xbf16>
      %202 = vector.shape_cast %198 : vector<8x9xbf16> to vector<1x8x9xbf16>
      tpu.vector_store %arg18[%c1_80, %199, %c0_81], %202 {strides = array<i32>} : memref<4x8x9xbf16, #tpu.memory_space<vmem>>, vector<1x8x9xbf16>,
      %203 = vector.extract_strided_slice %160 {offsets = [0, 16], sizes = [8, 8], strides = [1, 1]} : vector<8x96xf32> to vector<8x8xf32>
      %cst_82 = arith.constant 0.353553385 : f32
      %204 = vector.broadcast %cst_82 : f32 to vector<8x8xf32>
      %205 = arith.mulf %203, %204 : vector<8x8xf32>
      %206 = vector.extract_strided_slice %160 {offsets = [0, 48], sizes = [8, 8], strides = [1, 1]} : vector<8x96xf32> to vector<8x8xf32>
      %207 = vector.extract_strided_slice %160 {offsets = [0, 80], sizes = [8, 8], strides = [1, 1]} : vector<8x96xf32> to vector<8x8xf32>
      %208 = tpu.concatenate %207, %125 in 1 : vector<8x8xf32>, vector<8x1xf32> -> vector<8x9xf32>
      %209 = arith.truncf %205 : vector<8x8xf32> to vector<8x8xbf16>
      %c2 = arith.constant 2 : index
      %210 = arith.index_cast %127 : i32 to index
      %c0_83 = arith.constant 0 : index
      %211 = vector.load %arg16[%c2, %210, %c0_83] : memref<4x8x8xbf16, #tpu.memory_space<vmem>>, vector<1x8x8xbf16>
      %212 = vector.shape_cast %211 : vector<1x8x8xbf16> to vector<8x8xbf16>
      %213 = vector.shape_cast %209 : vector<8x8xbf16> to vector<1x8x8xbf16>
      tpu.vector_store %arg16[%c2, %210, %c0_83], %213 {strides = array<i32>} : memref<4x8x8xbf16, #tpu.memory_space<vmem>>, vector<1x8x8xbf16>,
      %214 = arith.truncf %206 : vector<8x8xf32> to vector<8x8xbf16>
      %c2_84 = arith.constant 2 : index
      %215 = arith.index_cast %127 : i32 to index
      %c0_85 = arith.constant 0 : index
      %216 = vector.load %arg17[%c2_84, %215, %c0_85] : memref<4x8x8xbf16, #tpu.memory_space<vmem>>, vector<1x8x8xbf16>
      %217 = vector.shape_cast %216 : vector<1x8x8xbf16> to vector<8x8xbf16>
      %218 = vector.shape_cast %214 : vector<8x8xbf16> to vector<1x8x8xbf16>
      tpu.vector_store %arg17[%c2_84, %215, %c0_85], %218 {strides = array<i32>} : memref<4x8x8xbf16, #tpu.memory_space<vmem>>, vector<1x8x8xbf16>,
      %219 = arith.truncf %208 : vector<8x9xf32> to vector<8x9xbf16>
      %c2_86 = arith.constant 2 : index
      %220 = arith.index_cast %127 : i32 to index
      %c0_87 = arith.constant 0 : index
      %221 = vector.load %arg18[%c2_86, %220, %c0_87] : memref<4x8x9xbf16, #tpu.memory_space<vmem>>, vector<1x8x9xbf16>
      %222 = vector.shape_cast %221 : vector<1x8x9xbf16> to vector<8x9xbf16>
      %223 = vector.shape_cast %219 : vector<8x9xbf16> to vector<1x8x9xbf16>
      tpu.vector_store %arg18[%c2_86, %220, %c0_87], %223 {strides = array<i32>} : memref<4x8x9xbf16, #tpu.memory_space<vmem>>, vector<1x8x9xbf16>,
      %224 = vector.extract_strided_slice %160 {offsets = [0, 24], sizes = [8, 8], strides = [1, 1]} : vector<8x96xf32> to vector<8x8xf32>
      %cst_88 = arith.constant 0.353553385 : f32
      %225 = vector.broadcast %cst_88 : f32 to vector<8x8xf32>
      %226 = arith.mulf %224, %225 : vector<8x8xf32>
      %227 = vector.extract_strided_slice %160 {offsets = [0, 56], sizes = [8, 8], strides = [1, 1]} : vector<8x96xf32> to vector<8x8xf32>
      %228 = vector.extract_strided_slice %160 {offsets = [0, 88], sizes = [8, 8], strides = [1, 1]} : vector<8x96xf32> to vector<8x8xf32>
      %229 = tpu.concatenate %228, %125 in 1 : vector<8x8xf32>, vector<8x1xf32> -> vector<8x9xf32>
      %230 = arith.truncf %226 : vector<8x8xf32> to vector<8x8xbf16>
      %c3 = arith.constant 3 : index
      %231 = arith.index_cast %127 : i32 to index
      %c0_89 = arith.constant 0 : index
      %232 = vector.load %arg16[%c3, %231, %c0_89] : memref<4x8x8xbf16, #tpu.memory_space<vmem>>, vector<1x8x8xbf16>
      %233 = vector.shape_cast %232 : vector<1x8x8xbf16> to vector<8x8xbf16>
      %234 = vector.shape_cast %230 : vector<8x8xbf16> to vector<1x8x8xbf16>
      tpu.vector_store %arg16[%c3, %231, %c0_89], %234 {strides = array<i32>} : memref<4x8x8xbf16, #tpu.memory_space<vmem>>, vector<1x8x8xbf16>,
      %235 = arith.truncf %227 : vector<8x8xf32> to vector<8x8xbf16>
      %c3_90 = arith.constant 3 : index
      %236 = arith.index_cast %127 : i32 to index
      %c0_91 = arith.constant 0 : index
      %237 = vector.load %arg17[%c3_90, %236, %c0_91] : memref<4x8x8xbf16, #tpu.memory_space<vmem>>, vector<1x8x8xbf16>
      %238 = vector.shape_cast %237 : vector<1x8x8xbf16> to vector<8x8xbf16>
      %239 = vector.shape_cast %235 : vector<8x8xbf16> to vector<1x8x8xbf16>
      tpu.vector_store %arg17[%c3_90, %236, %c0_91], %239 {strides = array<i32>} : memref<4x8x8xbf16, #tpu.memory_space<vmem>>, vector<1x8x8xbf16>,
      %240 = arith.truncf %229 : vector<8x9xf32> to vector<8x9xbf16>
      %c3_92 = arith.constant 3 : index
      %241 = arith.index_cast %127 : i32 to index
      %c0_93 = arith.constant 0 : index
      %242 = vector.load %arg18[%c3_92, %241, %c0_93] : memref<4x8x9xbf16, #tpu.memory_space<vmem>>, vector<1x8x9xbf16>
      %243 = vector.shape_cast %242 : vector<1x8x9xbf16> to vector<8x9xbf16>
      %244 = vector.shape_cast %240 : vector<8x9xbf16> to vector<1x8x9xbf16>
      tpu.vector_store %arg18[%c3_92, %241, %c0_93], %244 {strides = array<i32>} : memref<4x8x9xbf16, #tpu.memory_space<vmem>>, vector<1x8x9xbf16>,
      %c1_i32_94 = arith.constant 1 : i32
    } else {
    }
    %c8_i32 = arith.constant 8 : i32
    %3 = arith.muli %arg1, %c8_i32 : i32
    %4 = tpu.assume_multiple %3, 8 : i32
    %c0 = arith.constant 0 : index
    %5 = arith.index_cast %4 : i32 to index
    %c0_1 = arith.constant 0 : index
    %6 = vector.load %arg16[%c0, %5, %c0_1] : memref<4x8x8xbf16, #tpu.memory_space<vmem>>, vector<4x8x8xbf16>
    %cst = arith.constant 0xFF800000 : f32
    %7 = vector.broadcast %cst : f32 to vector<4x8x1xf32>
    %cst_2 = arith.constant 0.000000e+00 : f32
    %8 = vector.broadcast %cst_2 : f32 to vector<4x8x1xf32>
    %cst_3 = arith.constant 0.000000e+00 : f32
    %9 = vector.broadcast %cst_3 : f32 to vector<4x8x8xf32>
    %c0_i32_4 = arith.constant 0 : i32
    %c8_i32_5 = arith.constant 8 : i32
    %10 = arith.muli %c0_i32_4, %c8_i32_5 : i32
    %11 = tpu.assume_multiple %10, 8 : i32
    %c0_6 = arith.constant 0 : index
    %12 = arith.index_cast %11 : i32 to index
    %c0_7 = arith.constant 0 : index
    %13 = vector.load %arg17[%c0_6, %12, %c0_7] : memref<4x8x8xbf16, #tpu.memory_space<vmem>>, vector<4x8x8xbf16>
    %c0_8 = arith.constant 0 : index
    %14 = arith.index_cast %11 : i32 to index
    %c0_9 = arith.constant 0 : index
    %15 = vector.load %arg18[%c0_8, %14, %c0_9] : memref<4x8x9xbf16, #tpu.memory_space<vmem>>, vector<4x8x9xbf16>
    "tpu.trace_start"() <{level = 10 : i32, message = "hqd,hkd->hqk"}> : () -> ()
    %cst_10 = arith.constant dense<0.000000e+00> : vector<4x8x8xf32>
    %16 = tpu.matmul %6, %13, %cst_10 {dimension_numbers = #tpu.dot_dimension_numbers<[2], [2], [1], [1], [0, 0, 0, 1, 1, 1], [0], [0]>} : vector<4x8x8xbf16>, vector<4x8x8xbf16>, vector<4x8x8xf32> -> vector<4x8x8xf32>
    "tpu.trace_stop"() : () -> ()
    %cst_11 = arith.constant dense<0xFF800000> : vector<4x8xf32>
    %17 = vector.multi_reduction <maximumf>, %16, %cst_11 [2] : vector<4x8x8xf32> to vector<4x8xf32>
    %18 = vector.shape_cast %17 : vector<4x8xf32> to vector<4x8x1xf32>
    %19 = arith.maximumf %7, %18 : vector<4x8x1xf32>
    %20 = arith.subf %7, %19 : vector<4x8x1xf32>
    %21 = math.exp %20 : vector<4x8x1xf32>
    %22 = vector.broadcast %19 : vector<4x8x1xf32> to vector<4x8x8xf32>
    %23 = arith.subf %16, %22 : vector<4x8x8xf32>
    %24 = math.exp %23 : vector<4x8x8xf32>
    %25 = arith.truncf %24 : vector<4x8x8xf32> to vector<4x8x8xbf16>
    "tpu.trace_start"() <{level = 10 : i32, message = "hqk,hkd->hqd"}> : () -> ()
    %cst_12 = arith.constant dense<0.000000e+00> : vector<4x8x9xf32>
    %26 = tpu.matmul %25, %15, %cst_12 {dimension_numbers = #tpu.dot_dimension_numbers<[2], [1], [1], [2], [0, 0, 0, 1, 1, 2], [0], [0]>} : vector<4x8x8xbf16>, vector<4x8x9xbf16>, vector<4x8x9xf32> -> vector<4x8x9xf32>
    "tpu.trace_stop"() : () -> ()
    %27 = arith.mulf %21, %8 : vector<4x8x1xf32>
    %28 = vector.extract_strided_slice %26 {offsets = [0, 0, 8], sizes = [4, 8, 1], strides = [1, 1, 1]} : vector<4x8x9xf32> to vector<4x8x1xf32>
    %29 = arith.addf %27, %28 : vector<4x8x1xf32>
    %30 = vector.broadcast %21 : vector<4x8x1xf32> to vector<4x8x8xf32>
    %31 = arith.mulf %30, %9 : vector<4x8x8xf32>
    %32 = vector.extract_strided_slice %26 {offsets = [0, 0, 0], sizes = [4, 8, 8], strides = [1, 1, 1]} : vector<4x8x9xf32> to vector<4x8x8xf32>
    %33 = arith.addf %31, %32 : vector<4x8x8xf32>
    %c1_i32 = arith.constant 1 : i32
    %34 = tpu.reciprocal %29 {approx = true} : vector<4x8x1xf32> -> vector<4x8x1xf32>
    %c0_13 = arith.constant 0 : index
    %35 = arith.index_cast %4 : i32 to index
    %c0_14 = arith.constant 0 : index
    %36 = vector.load %arg2[%c0_13, %35, %c0_14] : memref<1x8x32xf32, #tpu.memory_space<vmem>>, vector<1x8x32xf32>
    %37 = vector.shape_cast %36 : vector<1x8x32xf32> to vector<8x32xf32>
    %cst_15 = arith.constant 0.000000e+00 : f32
    %38 = vector.broadcast %cst_15 : f32 to vector<8x32xf32>
    %39 = vector.extract_strided_slice %33 {offsets = [0, 0, 0], sizes = [1, 8, 8], strides = [1, 1, 1]} : vector<4x8x8xf32> to vector<1x8x8xf32>
    %40 = vector.shape_cast %39 : vector<1x8x8xf32> to vector<8x8xf32>
    %41 = vector.extract_strided_slice %34 {offsets = [0, 0, 0], sizes = [1, 8, 1], strides = [1, 1, 1]} : vector<4x8x1xf32> to vector<1x8x1xf32>
    %42 = vector.shape_cast %41 : vector<1x8x1xf32> to vector<8x1xf32>
    %43 = vector.broadcast %42 : vector<8x1xf32> to vector<8x8xf32>
    %44 = arith.mulf %40, %43 : vector<8x8xf32>
    %45 = arith.truncf %44 : vector<8x8xf32> to vector<8x8xbf16>
    %c0_16 = arith.constant 0 : index
    %c0_17 = arith.constant 0 : index
    %46 = vector.load %arg7[%c0_16, %c0_17] : memref<32x32xbf16, #tpu.memory_space<vmem>>, vector<8x32xbf16>
    %cst_18 = arith.constant dense<0.000000e+00> : vector<8x32xf32>
    %47 = tpu.matmul %45, %46, %cst_18 {dimension_numbers = #tpu.dot_dimension_numbers<[1], [0], [0], [1], [0, 0, 1, 1], [], []>} : vector<8x8xbf16>, vector<8x32xbf16>, vector<8x32xf32> -> vector<8x32xf32>
    %48 = arith.addf %38, %47 : vector<8x32xf32>
    %49 = vector.extract_strided_slice %33 {offsets = [1, 0, 0], sizes = [1, 8, 8], strides = [1, 1, 1]} : vector<4x8x8xf32> to vector<1x8x8xf32>
    %50 = vector.shape_cast %49 : vector<1x8x8xf32> to vector<8x8xf32>
    %51 = vector.extract_strided_slice %34 {offsets = [1, 0, 0], sizes = [1, 8, 1], strides = [1, 1, 1]} : vector<4x8x1xf32> to vector<1x8x1xf32>
    %52 = vector.shape_cast %51 : vector<1x8x1xf32> to vector<8x1xf32>
    %53 = vector.broadcast %52 : vector<8x1xf32> to vector<8x8xf32>
    %54 = arith.mulf %50, %53 : vector<8x8xf32>
    %55 = arith.truncf %54 : vector<8x8xf32> to vector<8x8xbf16>
    %c8 = arith.constant 8 : index
    %c0_19 = arith.constant 0 : index
    %56 = vector.load %arg7[%c8, %c0_19] : memref<32x32xbf16, #tpu.memory_space<vmem>>, vector<8x32xbf16>
    %cst_20 = arith.constant dense<0.000000e+00> : vector<8x32xf32>
    %57 = tpu.matmul %55, %56, %cst_20 {dimension_numbers = #tpu.dot_dimension_numbers<[1], [0], [0], [1], [0, 0, 1, 1], [], []>} : vector<8x8xbf16>, vector<8x32xbf16>, vector<8x32xf32> -> vector<8x32xf32>
    %58 = arith.addf %48, %57 : vector<8x32xf32>
    %59 = vector.extract_strided_slice %33 {offsets = [2, 0, 0], sizes = [1, 8, 8], strides = [1, 1, 1]} : vector<4x8x8xf32> to vector<1x8x8xf32>
    %60 = vector.shape_cast %59 : vector<1x8x8xf32> to vector<8x8xf32>
    %61 = vector.extract_strided_slice %34 {offsets = [2, 0, 0], sizes = [1, 8, 1], strides = [1, 1, 1]} : vector<4x8x1xf32> to vector<1x8x1xf32>
    %62 = vector.shape_cast %61 : vector<1x8x1xf32> to vector<8x1xf32>
    %63 = vector.broadcast %62 : vector<8x1xf32> to vector<8x8xf32>
    %64 = arith.mulf %60, %63 : vector<8x8xf32>
    %65 = arith.truncf %64 : vector<8x8xf32> to vector<8x8xbf16>
    %c16 = arith.constant 16 : index
    %c0_21 = arith.constant 0 : index
    %66 = vector.load %arg7[%c16, %c0_21] : memref<32x32xbf16, #tpu.memory_space<vmem>>, vector<8x32xbf16>
    %cst_22 = arith.constant dense<0.000000e+00> : vector<8x32xf32>
    %67 = tpu.matmul %65, %66, %cst_22 {dimension_numbers = #tpu.dot_dimension_numbers<[1], [0], [0], [1], [0, 0, 1, 1], [], []>} : vector<8x8xbf16>, vector<8x32xbf16>, vector<8x32xf32> -> vector<8x32xf32>
    %68 = arith.addf %58, %67 : vector<8x32xf32>
    %69 = vector.extract_strided_slice %33 {offsets = [3, 0, 0], sizes = [1, 8, 8], strides = [1, 1, 1]} : vector<4x8x8xf32> to vector<1x8x8xf32>
    %70 = vector.shape_cast %69 : vector<1x8x8xf32> to vector<8x8xf32>
    %71 = vector.extract_strided_slice %34 {offsets = [3, 0, 0], sizes = [1, 8, 1], strides = [1, 1, 1]} : vector<4x8x1xf32> to vector<1x8x1xf32>
    %72 = vector.shape_cast %71 : vector<1x8x1xf32> to vector<8x1xf32>
    %73 = vector.broadcast %72 : vector<8x1xf32> to vector<8x8xf32>
    %74 = arith.mulf %70, %73 : vector<8x8xf32>
    %75 = arith.truncf %74 : vector<8x8xf32> to vector<8x8xbf16>
    %c24 = arith.constant 24 : index
    %c0_23 = arith.constant 0 : index
    %76 = vector.load %arg7[%c24, %c0_23] : memref<32x32xbf16, #tpu.memory_space<vmem>>, vector<8x32xbf16>
    %cst_24 = arith.constant dense<0.000000e+00> : vector<8x32xf32>
    %77 = tpu.matmul %75, %76, %cst_24 {dimension_numbers = #tpu.dot_dimension_numbers<[1], [0], [0], [1], [0, 0, 1, 1], [], []>} : vector<8x8xbf16>, vector<8x32xbf16>, vector<8x32xf32> -> vector<8x32xf32>
    %78 = arith.addf %68, %77 : vector<8x32xf32>
    %c0_25 = arith.constant 0 : index
    %c0_26 = arith.constant 0 : index
    %79 = vector.load %arg8[%c0_25, %c0_26] : memref<1x32xf32, #tpu.memory_space<vmem>>, vector<1x32xf32>
    %80 = vector.broadcast %79 : vector<1x32xf32> to vector<8x32xf32>
    %81 = arith.addf %78, %80 : vector<8x32xf32>
    %82 = arith.addf %37, %81 : vector<8x32xf32>
    %c0_27 = arith.constant 0 : index
    %c0_28 = arith.constant 0 : index
    %83 = vector.load %arg9[%c0_27, %c0_28] : memref<1x32xf32, #tpu.memory_space<vmem>>, vector<1x32xf32>
    %c0_29 = arith.constant 0 : index
    %c0_30 = arith.constant 0 : index
    %84 = vector.load %arg10[%c0_29, %c0_30] : memref<1x32xf32, #tpu.memory_space<vmem>>, vector<1x32xf32>
    %cst_31 = arith.constant dense<0.000000e+00> : vector<8xf32>
    %85 = vector.multi_reduction <add>, %82, %cst_31 [1] : vector<8x32xf32> to vector<8xf32>
    %86 = vector.shape_cast %85 : vector<8xf32> to vector<8x1xf32>
    %cst_32 = arith.constant 3.200000e+01 : f32
    %87 = vector.broadcast %cst_32 : f32 to vector<8x1xf32>
    %88 = arith.divf %86, %87 : vector<8x1xf32>
    %89 = vector.broadcast %88 : vector<8x1xf32> to vector<8x32xf32>
    %90 = arith.subf %82, %89 : vector<8x32xf32>
    %91 = arith.mulf %90, %90 : vector<8x32xf32>
    %cst_33 = arith.constant dense<0.000000e+00> : vector<8xf32>
    %92 = vector.multi_reduction <add>, %91, %cst_33 [1] : vector<8x32xf32> to vector<8xf32>
    %93 = vector.shape_cast %92 : vector<8xf32> to vector<8x1xf32>
    %cst_34 = arith.constant 3.200000e+01 : f32
    %94 = vector.broadcast %cst_34 : f32 to vector<8x1xf32>
    %95 = arith.divf %93, %94 : vector<8x1xf32>
    %96 = vector.broadcast %88 : vector<8x1xf32> to vector<8x32xf32>
    %97 = arith.subf %82, %96 : vector<8x32xf32>
    %cst_35 = arith.constant 9.99999974E-6 : f32
    %98 = vector.broadcast %cst_35 : f32 to vector<8x1xf32>
    %99 = arith.addf %95, %98 : vector<8x1xf32>
    %100 = math.rsqrt %99 : vector<8x1xf32>
    %101 = vector.broadcast %100 : vector<8x1xf32> to vector<8x32xf32>
    %102 = arith.mulf %97, %101 : vector<8x32xf32>
    %103 = vector.broadcast %83 : vector<1x32xf32> to vector<8x32xf32>
    %104 = arith.mulf %102, %103 : vector<8x32xf32>
    %105 = vector.broadcast %84 : vector<1x32xf32> to vector<8x32xf32>
    %106 = arith.addf %104, %105 : vector<8x32xf32>
    %107 = arith.truncf %106 : vector<8x32xf32> to vector<8x32xbf16>
    %c0_36 = arith.constant 0 : index
    %c0_37 = arith.constant 0 : index
    %108 = vector.load %arg11[%c0_36, %c0_37] : memref<32x128xbf16, #tpu.memory_space<vmem>>, vector<32x128xbf16>
    %cst_38 = arith.constant dense<0.000000e+00> : vector<8x128xf32>
    %109 = tpu.matmul %107, %108, %cst_38 {dimension_numbers = #tpu.dot_dimension_numbers<[1], [0], [0], [1], [0, 0, 1, 1], [], []>} : vector<8x32xbf16>, vector<32x128xbf16>, vector<8x128xf32> -> vector<8x128xf32>
    %c0_39 = arith.constant 0 : index
    %c0_40 = arith.constant 0 : index
    %110 = vector.load %arg12[%c0_39, %c0_40] : memref<1x128xf32, #tpu.memory_space<vmem>>, vector<1x128xf32>
    %111 = vector.broadcast %110 : vector<1x128xf32> to vector<8x128xf32>
    %112 = arith.addf %109, %111 : vector<8x128xf32>
    %cst_41 = arith.constant 0.000000e+00 : f32
    %113 = vector.broadcast %cst_41 : f32 to vector<8x128xf32>
    %114 = arith.maximumf %112, %113 : vector<8x128xf32>
    %115 = arith.truncf %114 : vector<8x128xf32> to vector<8x128xbf16>
    %c0_42 = arith.constant 0 : index
    %c0_43 = arith.constant 0 : index
    %116 = vector.load %arg13[%c0_42, %c0_43] : memref<128x32xbf16, #tpu.memory_space<vmem>>, vector<128x32xbf16>
    %cst_44 = arith.constant dense<0.000000e+00> : vector<8x32xf32>
    %117 = tpu.matmul %115, %116, %cst_44 {dimension_numbers = #tpu.dot_dimension_numbers<[1], [0], [0], [1], [0, 0, 1, 1], [], []>} : vector<8x128xbf16>, vector<128x32xbf16>, vector<8x32xf32> -> vector<8x32xf32>
    %c0_45 = arith.constant 0 : index
    %c0_46 = arith.constant 0 : index
    %118 = vector.load %arg14[%c0_45, %c0_46] : memref<1x32xf32, #tpu.memory_space<vmem>>, vector<1x32xf32>
    %119 = vector.broadcast %118 : vector<1x32xf32> to vector<8x32xf32>
    %120 = arith.addf %117, %119 : vector<8x32xf32>
    %121 = arith.addf %37, %120 : vector<8x32xf32>
    %c0_47 = arith.constant 0 : index
    %c0_48 = arith.constant 0 : index
    %c0_49 = arith.constant 0 : index
    %122 = vector.load %arg15[%c0_47, %c0_48, %c0_49] : memref<1x8x32xf32, #tpu.memory_space<vmem>>, vector<1x8x32xf32>
    %123 = vector.shape_cast %122 : vector<1x8x32xf32> to vector<8x32xf32>
    %124 = vector.shape_cast %121 : vector<8x32xf32> to vector<1x8x32xf32>
    tpu.vector_store %arg15[%c0_47, %c0_48, %c0_49], %124 {strides = array<i32>} : memref<1x8x32xf32, #tpu.memory_space<vmem>>, vector<1x8x32xf32>,
    return
  }
  func.func @transform_0(%arg0: i32, %arg1: i32) -> (i32, i32, i32) {
    %c0_i32 = arith.constant 0 : i32
    %c0_i32_0 = arith.constant 0 : i32
    %c0_i32_1 = arith.constant 0 : i32
    return %arg0, %c0_i32, %c0_i32_0 : i32, i32, i32
  }
  func.func @transform_1(%arg0: i32, %arg1: i32) -> (i32, i32) {
    %c0_i32 = arith.constant 0 : i32
    %c0_i32_0 = arith.constant 0 : i32
    %c0_i32_1 = arith.constant 0 : i32
    return %c0_i32, %c0_i32_0 : i32, i32
  }
  func.func @transform_2(%arg0: i32, %arg1: i32) -> (i32, i32) {
    %c0_i32 = arith.constant 0 : i32
    %c0_i32_0 = arith.constant 0 : i32
    %c0_i32_1 = arith.constant 0 : i32
    return %c0_i32, %c0_i32_0 : i32, i32
  }
  func.func @transform_3(%arg0: i32, %arg1: i32) -> (i32, i32) {
    %c0_i32 = arith.constant 0 : i32
    %c0_i32_0 = arith.constant 0 : i32
    %c0_i32_1 = arith.constant 0 : i32
    return %c0_i32, %c0_i32_0 : i32, i32
  }
  func.func @transform_4(%arg0: i32, %arg1: i32) -> (i32, i32) {
    %c0_i32 = arith.constant 0 : i32
    %c0_i32_0 = arith.constant 0 : i32
    %c0_i32_1 = arith.constant 0 : i32
    return %c0_i32, %c0_i32_0 : i32, i32
  }
  func.func @transform_5(%arg0: i32, %arg1: i32) -> (i32, i32) {
    %c0_i32 = arith.constant 0 : i32
    %c0_i32_0 = arith.constant 0 : i32
    %c0_i32_1 = arith.constant 0 : i32
    return %c0_i32, %c0_i32_0 : i32, i32
  }
  func.func @transform_6(%arg0: i32, %arg1: i32) -> (i32, i32) {
    %c0_i32 = arith.constant 0 : i32
    %c0_i32_0 = arith.constant 0 : i32
    %c0_i32_1 = arith.constant 0 : i32
    return %c0_i32, %c0_i32_0 : i32, i32
  }
  func.func @transform_7(%arg0: i32, %arg1: i32) -> (i32, i32) {
    %c0_i32 = arith.constant 0 : i32
    %c0_i32_0 = arith.constant 0 : i32
    %c0_i32_1 = arith.constant 0 : i32
    return %c0_i32, %c0_i32_0 : i32, i32
  }
  func.func @transform_8(%arg0: i32, %arg1: i32) -> (i32, i32) {
    %c0_i32 = arith.constant 0 : i32
    %c0_i32_0 = arith.constant 0 : i32
    %c0_i32_1 = arith.constant 0 : i32
    return %c0_i32, %c0_i32_0 : i32, i32
  }
  func.func @transform_9(%arg0: i32, %arg1: i32) -> (i32, i32) {
    %c0_i32 = arith.constant 0 : i32
    %c0_i32_0 = arith.constant 0 : i32
    %c0_i32_1 = arith.constant 0 : i32
    return %c0_i32, %c0_i32_0 : i32, i32
  }
  func.func @transform_10(%arg0: i32, %arg1: i32) -> (i32, i32) {
    %c0_i32 = arith.constant 0 : i32
    %c0_i32_0 = arith.constant 0 : i32
    %c0_i32_1 = arith.constant 0 : i32
    return %c0_i32, %c0_i32_0 : i32, i32
  }
  func.func @transform_11(%arg0: i32, %arg1: i32) -> (i32, i32) {
    %c0_i32 = arith.constant 0 : i32
    %c0_i32_0 = arith.constant 0 : i32
    %c0_i32_1 = arith.constant 0 : i32
    return %c0_i32, %c0_i32_0 : i32, i32
  }
  func.func @transform_12(%arg0: i32, %arg1: i32) -> (i32, i32) {
    %c0_i32 = arith.constant 0 : i32
    %c0_i32_0 = arith.constant 0 : i32
    %c0_i32_1 = arith.constant 0 : i32
    return %c0_i32, %c0_i32_0 : i32, i32
  }
  func.func @transform_13(%arg0: i32, %arg1: i32) -> (i32, i32, i32) {
    %c0_i32 = arith.constant 0 : i32
    %c0_i32_0 = arith.constant 0 : i32
    return %arg0, %arg1, %c0_i32 : i32, i32, i32
  }
}

</mosaic_0001>

<llo_original>
// kernel: tpu_custom_call.1
$region0: #{tpu_custom_call.1}
  #allocation0 [shape = 'u32[]', space=smem, size = 0x4, offset = 0x4, fixed_abs, tag = 'smem constant byte address 0x4 - core index']
  #allocation1 [shape = 'u32[144,128]{1,0:T(1,128)}', space=vmem, size = 0x12000, scoped, tag = 'internal scratch']
  #allocation2 [shape = 'bf16[4,8,8]{2,1,0:T(8,128)(2,1)}', space=vmem, size = 0x2000, scoped, tag = 'scratch operand']
  #allocation3 [shape = 'bf16[4,8,8]{2,1,0:T(8,128)(2,1)}', space=vmem, size = 0x2000, scoped, tag = 'scratch operand']
  #allocation4 [shape = 'bf16[4,8,9]{2,1,0:T(8,128)(2,1)}', space=vmem, size = 0x2000, scoped, tag = 'scratch operand']
  %s0 = inlined_call_operand.vmem [shape: f32[2,8,32], index: 0, kind: input, shape index: {}]
  %s1 = inlined_call_operand.vmem [shape: f32[1,32], index: 1, kind: input, shape index: {}]
  %s2 = inlined_call_operand.vmem [shape: f32[1,32], index: 2, kind: input, shape index: {}]
  %s3 = inlined_call_operand.vmem [shape: bf16[32,96], index: 3, kind: input, shape index: {}]
  %s4 = inlined_call_operand.vmem [shape: f32[1,96], index: 4, kind: input, shape index: {}]
  %s5 = inlined_call_operand.vmem [shape: bf16[32,32], index: 5, kind: input, shape index: {}]
  %s6 = inlined_call_operand.vmem [shape: f32[1,32], index: 6, kind: input, shape index: {}]
  %s7 = inlined_call_operand.vmem [shape: f32[1,32], index: 7, kind: input, shape index: {}]
  %s8 = inlined_call_operand.vmem [shape: f32[1,32], index: 8, kind: input, shape index: {}]
  %s9 = inlined_call_operand.vmem [shape: bf16[32,128], index: 9, kind: input, shape index: {}]
  %s10 = inlined_call_operand.vmem [shape: f32[1,128], index: 10, kind: input, shape index: {}]
  %s11 = inlined_call_operand.vmem [shape: bf16[128,32], index: 11, kind: input, shape index: {}]
  %s12 = inlined_call_operand.vmem [shape: f32[1,32], index: 12, kind: input, shape index: {}]
  %s13 = inlined_call_operand.hbm [shape: f32[2,8,32], index: 13, kind: output, shape index: {}]
  %s14 = sld [smem:[#allocation0]]
  $region89: #{tpu_custom_call.1} parent=0
    _
  %s16 = ssub.s32 1, %s14
  %s17 = scalar_select 0, %s16, %s14
  $region1: #{tpu_custom_call.1} parent=0
    #allocation5 [shape = 'u8[8192]{0}', space=vmem, size = 0x2000, scoped, tag = 'output window, operand 0']
    #allocation6 [shape = 's32[2]{0}', space=sflag, size = 0x8, scoped, tag = 'scoped memory for tpu_custom_call.1']
    %18 = vsyncpa [#allocation6], 0
    %s19 = scalar_lea.sflag [#allocation6], 1
    %20 = vsyncpa %s19, 0
    loop: start=0, step=1, limit=4
    $region2: #{tpu_custom_call.1} parent=1 // loop_pre_header
      _
    $region3: #{tpu_custom_call.1} parent=1 // loop_header
      %s22 = sphi 0, %s26
      %p23 = scmp.ge.s32.totalorder %s22, 4
      %s29 = sphi 0, %s41
      %s30 = sphi 0, %s37
      %s31 = sphi 0, %s29
      %s32 = sphi 0, %s30
      %s33 = sphi 0, %s31
      %s34 = sphi 0, %s32
      %s44 = sphi 0, %s46
      %s47 = sphi 0, %s44
      %s48 = sphi 0, %s47
      %s64 = sphi 0, %s48
      %s68 = sphi 0, %s68
      %s70 = sphi 0, %s68
      %s71 = sphi 0, %s70
      %s85 = sphi 0, %s71
      %s89 = sphi 0, %s89
      %s91 = sphi 0, %s89
      %s92 = sphi 0, %s91
      %s106 = sphi 0, %s92
      %s110 = sphi 0, %s110
      %s112 = sphi 0, %s110
      %s113 = sphi 0, %s112
      %s127 = sphi 0, %s113
      %s131 = sphi 0, %s131
      %s133 = sphi 0, %s131
      %s134 = sphi 0, %s133
      %s148 = sphi 0, %s134
      %s152 = sphi 0, %s152
      %s154 = sphi 0, %s152
      %s155 = sphi 0, %s154
      %s169 = sphi 0, %s155
      %s173 = sphi 0, %s173
      %s175 = sphi 0, %s173
      %s176 = sphi 0, %s175
      %s190 = sphi 0, %s176
      %s194 = sphi 0, %s194
      %s196 = sphi 0, %s194
      %s197 = sphi 0, %s196
      %s211 = sphi 0, %s197
      %s215 = sphi 0, %s215
      %s217 = sphi 0, %s215
      %s218 = sphi 0, %s217
      %s232 = sphi 0, %s218
      %s236 = sphi 0, %s236
      %s238 = sphi 0, %s236
      %s239 = sphi 0, %s238
      %s253 = sphi 0, %s239
      %s257 = sphi 0, %s257
      %s259 = sphi 0, %s257
      %s260 = sphi 0, %s259
      %s274 = sphi 0, %s260
      %s278 = sphi 0, %s278
      %s280 = sphi 0, %s278
      %s281 = sphi 0, %s280
      %s295 = sphi 0, %s281
      %s299 = sphi 0, %s299
      %s301 = sphi 0, %s299
      %s302 = sphi 0, %s301
      %s316 = sphi 0, %s302
      %s324 = sphi 0, %s326
      %s327 = sphi 0, %s324
      %s328 = sphi 0, %s327
      %s344 = sphi 0, %s328
    $region4: #{tpu_custom_call.1} parent=1 // loop_header_branch
      %25 = sbr.rel (%p23) target = $region8
    $region5: #{tpu_custom_call.1} parent=1 // loop_body
      %s27 = ssub.s32 %s22, 1
      %s28 = ssub.s32 %s22, 2
      %s35 = sadd.s32 1, %s30
      %p36 = scmp.ge.s32.totalorder %s35, 1
      %s37 = scalar_select %p36, 0, %s35
      %s38 = sadd.s32 1, %s29
      %s39 = scalar_select %p36, %s38, %s29
      %p40 = scmp.ge.s32.totalorder %s39, 2
      %s41 = scalar_select %p40, 0, %s39
      %s42 = ssub.s32 %s29, %s41
      %p43 = scmp.eq.s32.totalorder %s42, 0
      %s45 = sadd.s32 %s44, 1
      %s46 = scalar_select %p43, %s44, %s45
      %p49 = pneg %p43
      %p50 = scmp.eq.s32.totalorder %s22, 1
      %p51 = por %p49, %p50
      %p52 = scmp.ne.s32.totalorder %s44, %s47
      %p53 = scmp.eq.s32.totalorder %s22, 0
      %p54 = por %p52, %p53
      %p55 = scmp.ne.s32.totalorder %s44, %s47
      %p56 = scmp.eq.s32.totalorder %s27, 1
      %p57 = por %p55, %p56
      %p58 = scmp.ne.s32.totalorder %s47, %s48
      %p59 = scmp.eq.s32.totalorder %s27, 0
      %p60 = por %p58, %p59
      %p61 = scmp.ne.s32.totalorder %s47, %s48
      %p62 = scmp.eq.s32.totalorder %s28, 1
      %p63 = por %p61, %p62
      %p65 = scmp.ne.s32.totalorder %s48, %s64
      %p66 = scmp.eq.s32.totalorder %s28, 0
      %p67 = por %p65, %p66
      %s69 = sadd.s32 %s68, 1
      %p72 = scmp.eq.s32.totalorder %s22, 1
      %p73 = scmp.ne.s32.totalorder %s68, %s70
      %p74 = scmp.eq.s32.totalorder %s22, 0
      %p75 = por %p73, %p74
      %p76 = scmp.ne.s32.totalorder %s68, %s70
      %p77 = scmp.eq.s32.totalorder %s27, 1
      %p78 = por %p76, %p77
      %p79 = scmp.ne.s32.totalorder %s70, %s71
      %p80 = scmp.eq.s32.totalorder %s27, 0
      %p81 = por %p79, %p80
      %p82 = scmp.ne.s32.totalorder %s70, %s71
      %p83 = scmp.eq.s32.totalorder %s28, 1
      %p84 = por %p82, %p83
      %p86 = scmp.ne.s32.totalorder %s71, %s85
      %p87 = scmp.eq.s32.totalorder %s28, 0
      %p88 = por %p86, %p87
      %s90 = sadd.s32 %s89, 1
      %p93 = scmp.eq.s32.totalorder %s22, 1
      %p94 = scmp.ne.s32.totalorder %s89, %s91
      %p95 = scmp.eq.s32.totalorder %s22, 0
      %p96 = por %p94, %p95
      %p97 = scmp.ne.s32.totalorder %s89, %s91
      %p98 = scmp.eq.s32.totalorder %s27, 1
      %p99 = por %p97, %p98
      %p100 = scmp.ne.s32.totalorder %s91, %s92
      %p101 = scmp.eq.s32.totalorder %s27, 0
      %p102 = por %p100, %p101
      %p103 = scmp.ne.s32.totalorder %s91, %s92
      %p104 = scmp.eq.s32.totalorder %s28, 1
      %p105 = por %p103, %p104
      %p107 = scmp.ne.s32.totalorder %s92, %s106
      %p108 = scmp.eq.s32.totalorder %s28, 0
      %p109 = por %p107, %p108
      %s111 = sadd.s32 %s110, 1
      %p114 = scmp.eq.s32.totalorder %s22, 1
      %p115 = scmp.ne.s32.totalorder %s110, %s112
      %p116 = scmp.eq.s32.totalorder %s22, 0
      %p117 = por %p115, %p116
      %p118 = scmp.ne.s32.totalorder %s110, %s112
      %p119 = scmp.eq.s32.totalorder %s27, 1
      %p120 = por %p118, %p119
      %p121 = scmp.ne.s32.totalorder %s112, %s113
      %p122 = scmp.eq.s32.totalorder %s27, 0
      %p123 = por %p121, %p122
      %p124 = scmp.ne.s32.totalorder %s112, %s113
      %p125 = scmp.eq.s32.totalorder %s28, 1
      %p126 = por %p124, %p125
      %p128 = scmp.ne.s32.totalorder %s113, %s127
      %p129 = scmp.eq.s32.totalorder %s28, 0
      %p130 = por %p128, %p129
      %s132 = sadd.s32 %s131, 1
      %p135 = scmp.eq.s32.totalorder %s22, 1
      %p136 = scmp.ne.s32.totalorder %s131, %s133
      %p137 = scmp.eq.s32.totalorder %s22, 0
      %p138 = por %p136, %p137
      %p139 = scmp.ne.s32.totalorder %s131, %s133
      %p140 = scmp.eq.s32.totalorder %s27, 1
      %p141 = por %p139, %p140
      %p142 = scmp.ne.s32.totalorder %s133, %s134
      %p143 = scmp.eq.s32.totalorder %s27, 0
      %p144 = por %p142, %p143
      %p145 = scmp.ne.s32.totalorder %s133, %s134
      %p146 = scmp.eq.s32.totalorder %s28, 1
      %p147 = por %p145, %p146
      %p149 = scmp.ne.s32.totalorder %s134, %s148
      %p150 = scmp.eq.s32.totalorder %s28, 0
      %p151 = por %p149, %p150
      %s153 = sadd.s32 %s152, 1
      %p156 = scmp.eq.s32.totalorder %s22, 1
      %p157 = scmp.ne.s32.totalorder %s152, %s154
      %p158 = scmp.eq.s32.totalorder %s22, 0
      %p159 = por %p157, %p158
      %p160 = scmp.ne.s32.totalorder %s152, %s154
      %p161 = scmp.eq.s32.totalorder %s27, 1
      %p162 = por %p160, %p161
      %p163 = scmp.ne.s32.totalorder %s154, %s155
      %p164 = scmp.eq.s32.totalorder %s27, 0
      %p165 = por %p163, %p164
      %p166 = scmp.ne.s32.totalorder %s154, %s155
      %p167 = scmp.eq.s32.totalorder %s28, 1
      %p168 = por %p166, %p167
      %p170 = scmp.ne.s32.totalorder %s155, %s169
      %p171 = scmp.eq.s32.totalorder %s28, 0
      %p172 = por %p170, %p171
      %s174 = sadd.s32 %s173, 1
      %p177 = scmp.eq.s32.totalorder %s22, 1
      %p178 = scmp.ne.s32.totalorder %s173, %s175
      %p179 = scmp.eq.s32.totalorder %s22, 0
      %p180 = por %p178, %p179
      %p181 = scmp.ne.s32.totalorder %s173, %s175
      %p182 = scmp.eq.s32.totalorder %s27, 1
      %p183 = por %p181, %p182
      %p184 = scmp.ne.s32.totalorder %s175, %s176
      %p185 = scmp.eq.s32.totalorder %s27, 0
      %p186 = por %p184, %p185
      %p187 = scmp.ne.s32.totalorder %s175, %s176
      %p188 = scmp.eq.s32.totalorder %s28, 1
      %p189 = por %p187, %p188
      %p191 = scmp.ne.s32.totalorder %s176, %s190
      %p192 = scmp.eq.s32.totalorder %s28, 0
      %p193 = por %p191, %p192
      %s195 = sadd.s32 %s194, 1
      %p198 = scmp.eq.s32.totalorder %s22, 1
      %p199 = scmp.ne.s32.totalorder %s194, %s196
      %p200 = scmp.eq.s32.totalorder %s22, 0
      %p201 = por %p199, %p200
      %p202 = scmp.ne.s32.totalorder %s194, %s196
      %p203 = scmp.eq.s32.totalorder %s27, 1
      %p204 = por %p202, %p203
      %p205 = scmp.ne.s32.totalorder %s196, %s197
      %p206 = scmp.eq.s32.totalorder %s27, 0
      %p207 = por %p205, %p206
      %p208 = scmp.ne.s32.totalorder %s196, %s197
      %p209 = scmp.eq.s32.totalorder %s28, 1
      %p210 = por %p208, %p209
      %p212 = scmp.ne.s32.totalorder %s197, %s211
      %p213 = scmp.eq.s32.totalorder %s28, 0
      %p214 = por %p212, %p213
      %s216 = sadd.s32 %s215, 1
      %p219 = scmp.eq.s32.totalorder %s22, 1
      %p220 = scmp.ne.s32.totalorder %s215, %s217
      %p221 = scmp.eq.s32.totalorder %s22, 0
      %p222 = por %p220, %p221
      %p223 = scmp.ne.s32.totalorder %s215, %s217
      %p224 = scmp.eq.s32.totalorder %s27, 1
      %p225 = por %p223, %p224
      %p226 = scmp.ne.s32.totalorder %s217, %s218
      %p227 = scmp.eq.s32.totalorder %s27, 0
      %p228 = por %p226, %p227
      %p229 = scmp.ne.s32.totalorder %s217, %s218
      %p230 = scmp.eq.s32.totalorder %s28, 1
      %p231 = por %p229, %p230
      %p233 = scmp.ne.s32.totalorder %s218, %s232
      %p234 = scmp.eq.s32.totalorder %s28, 0
      %p235 = por %p233, %p234
      %s237 = sadd.s32 %s236, 1
      %p240 = scmp.eq.s32.totalorder %s22, 1
      %p241 = scmp.ne.s32.totalorder %s236, %s238
      %p242 = scmp.eq.s32.totalorder %s22, 0
      %p243 = por %p241, %p242
      %p244 = scmp.ne.s32.totalorder %s236, %s238
      %p245 = scmp.eq.s32.totalorder %s27, 1
      %p246 = por %p244, %p245
      %p247 = scmp.ne.s32.totalorder %s238, %s239
      %p248 = scmp.eq.s32.totalorder %s27, 0
      %p249 = por %p247, %p248
      %p250 = scmp.ne.s32.totalorder %s238, %s239
      %p251 = scmp.eq.s32.totalorder %s28, 1
      %p252 = por %p250, %p251
      %p254 = scmp.ne.s32.totalorder %s239, %s253
      %p255 = scmp.eq.s32.totalorder %s28, 0
      %p256 = por %p254, %p255
      %s258 = sadd.s32 %s257, 1
      %p261 = scmp.eq.s32.totalorder %s22, 1
      %p262 = scmp.ne.s32.totalorder %s257, %s259
      %p263 = scmp.eq.s32.totalorder %s22, 0
      %p264 = por %p262, %p263
      %p265 = scmp.ne.s32.totalorder %s257, %s259
      %p266 = scmp.eq.s32.totalorder %s27, 1
      %p267 = por %p265, %p266
      %p268 = scmp.ne.s32.totalorder %s259, %s260
      %p269 = scmp.eq.s32.totalorder %s27, 0
      %p270 = por %p268, %p269
      %p271 = scmp.ne.s32.totalorder %s259, %s260
      %p272 = scmp.eq.s32.totalorder %s28, 1
      %p273 = por %p271, %p272
      %p275 = scmp.ne.s32.totalorder %s260, %s274
      %p276 = scmp.eq.s32.totalorder %s28, 0
      %p277 = por %p275, %p276
      %s279 = sadd.s32 %s278, 1
      %p282 = scmp.eq.s32.totalorder %s22, 1
      %p283 = scmp.ne.s32.totalorder %s278, %s280
      %p284 = scmp.eq.s32.totalorder %s22, 0
      %p285 = por %p283, %p284
      %p286 = scmp.ne.s32.totalorder %s278, %s280
      %p287 = scmp.eq.s32.totalorder %s27, 1
      %p288 = por %p286, %p287
      %p289 = scmp.ne.s32.totalorder %s280, %s281
      %p290 = scmp.eq.s32.totalorder %s27, 0
      %p291 = por %p289, %p290
      %p292 = scmp.ne.s32.totalorder %s280, %s281
      %p293 = scmp.eq.s32.totalorder %s28, 1
      %p294 = por %p292, %p293
      %p296 = scmp.ne.s32.totalorder %s281, %s295
      %p297 = scmp.eq.s32.totalorder %s28, 0
      %p298 = por %p296, %p297
      %s300 = sadd.s32 %s299, 1
      %p303 = scmp.eq.s32.totalorder %s22, 1
      %p304 = scmp.ne.s32.totalorder %s299, %s301
      %p305 = scmp.eq.s32.totalorder %s22, 0
      %p306 = por %p304, %p305
      %p307 = scmp.ne.s32.totalorder %s299, %s301
      %p308 = scmp.eq.s32.totalorder %s27, 1
      %p309 = por %p307, %p308
      %p310 = scmp.ne.s32.totalorder %s301, %s302
      %p311 = scmp.eq.s32.totalorder %s27, 0
      %p312 = por %p310, %p311
      %p313 = scmp.ne.s32.totalorder %s301, %s302
      %p314 = scmp.eq.s32.totalorder %s28, 1
      %p315 = por %p313, %p314
      %p317 = scmp.ne.s32.totalorder %s302, %s316
      %p318 = scmp.eq.s32.totalorder %s28, 0
      %p319 = por %p317, %p318
      %s320 = ssub.s32 %s29, %s41
      %s321 = ssub.s32 %s30, %s37
      %s322 = sor.u32 %s320, %s321
      %p323 = scmp.eq.s32.totalorder %s322, 0
      %s325 = sadd.s32 %s324, 1
      %s326 = scalar_select %p323, %s324, %s325
      %p329 = pneg %p323
      %p330 = scmp.eq.s32.totalorder %s22, 1
      %p331 = por %p329, %p330
      %p332 = scmp.ne.s32.totalorder %s324, %s327
      %p333 = scmp.eq.s32.totalorder %s22, 0
      %p334 = por %p332, %p333
      %p335 = scmp.ne.s32.totalorder %s324, %s327
      %p336 = scmp.eq.s32.totalorder %s27, 1
      %p337 = por %p335, %p336
      %p338 = scmp.ne.s32.totalorder %s327, %s328
      %p339 = scmp.eq.s32.totalorder %s27, 0
      %p340 = por %p338, %p339
      %p341 = scmp.ne.s32.totalorder %s327, %s328
      %p342 = scmp.eq.s32.totalorder %s28, 1
      %p343 = por %p341, %p342
      %p345 = scmp.ne.s32.totalorder %s328, %s344
      %p346 = scmp.eq.s32.totalorder %s28, 0
      %p347 = por %p345, %p346
      %p348 = scmp.le.s32.totalorder 1, %s22
      %p349 = scmp.lt.s32.totalorder %s22, 3
      %p350 = pnand %p348, %p349
      %p351 = pneg %p350
      // Predicated region
      $region9: #{tpu_custom_call.1} parent=5 // pred_check
        _
      $region10: #{tpu_custom_call.1} parent=5 // pred_check_branch
        %353 = sbr.rel (%p350) target = $region12
      $region11: #{tpu_custom_call.1} parent=5 // pred_region
        %s354 = ssub.s32 %s22, 1
        // Predicated region
        $region13: #{tpu_custom_call.1} parent=11 // pred_check
          %p355 = pneg %p81
        $region14: #{tpu_custom_call.1} parent=11 // pred_check_branch
          %357 = sbr.rel (%p355) target = $region16
        $region15: #{tpu_custom_call.1} parent=11 // pred_region
          _
        $region16: #{tpu_custom_call.1} parent=11 // pred_fallthru
          _
        // Predicated region
        $region17: #{tpu_custom_call.1} parent=11 // pred_check
          %p358 = pneg %p102
        $region18: #{tpu_custom_call.1} parent=11 // pred_check_branch
          %360 = sbr.rel (%p358) target = $region20
        $region19: #{tpu_custom_call.1} parent=11 // pred_region
          _
        $region20: #{tpu_custom_call.1} parent=11 // pred_fallthru
          _
        // Predicated region
        $region21: #{tpu_custom_call.1} parent=11 // pred_check
          %p361 = pneg %p123
        $region22: #{tpu_custom_call.1} parent=11 // pred_check_branch
          %363 = sbr.rel (%p361) target = $region24
        $region23: #{tpu_custom_call.1} parent=11 // pred_region
          _
        $region24: #{tpu_custom_call.1} parent=11 // pred_fallthru
          _
        // Predicated region
        $region25: #{tpu_custom_call.1} parent=11 // pred_check
          %p364 = pneg %p144
        $region26: #{tpu_custom_call.1} parent=11 // pred_check_branch
          %366 = sbr.rel (%p364) target = $region28
        $region27: #{tpu_custom_call.1} parent=11 // pred_region
          _
        $region28: #{tpu_custom_call.1} parent=11 // pred_fallthru
          _
        // Predicated region
        $region29: #{tpu_custom_call.1} parent=11 // pred_check
          %p367 = pneg %p165
        $region30: #{tpu_custom_call.1} parent=11 // pred_check_branch
          %369 = sbr.rel (%p367) target = $region32
        $region31: #{tpu_custom_call.1} parent=11 // pred_region
          _
        $region32: #{tpu_custom_call.1} parent=11 // pred_fallthru
          _
        // Predicated region
        $region33: #{tpu_custom_call.1} parent=11 // pred_check
          %p370 = pneg %p186
        $region34: #{tpu_custom_call.1} parent=11 // pred_check_branch
          %372 = sbr.rel (%p370) target = $region36
        $region35: #{tpu_custom_call.1} parent=11 // pred_region
          _
        $region36: #{tpu_custom_call.1} parent=11 // pred_fallthru
          _
        // Predicated region
        $region37: #{tpu_custom_call.1} parent=11 // pred_check
          %p373 = pneg %p207
        $region38: #{tpu_custom_call.1} parent=11 // pred_check_branch
          %375 = sbr.rel (%p373) target = $region40
        $region39: #{tpu_custom_call.1} parent=11 // pred_region
          _
        $region40: #{tpu_custom_call.1} parent=11 // pred_fallthru
          _
        // Predicated region
        $region41: #{tpu_custom_call.1} parent=11 // pred_check
          %p376 = pneg %p228
        $region42: #{tpu_custom_call.1} parent=11 // pred_check_branch
          %378 = sbr.rel (%p376) target = $region44
        $region43: #{tpu_custom_call.1} parent=11 // pred_region
          _
        $region44: #{tpu_custom_call.1} parent=11 // pred_fallthru
          _
        // Predicated region
        $region45: #{tpu_custom_call.1} parent=11 // pred_check
          %p379 = pneg %p249
        $region46: #{tpu_custom_call.1} parent=11 // pred_check_branch
          %381 = sbr.rel (%p379) target = $region48
        $region47: #{tpu_custom_call.1} parent=11 // pred_region
          _
        $region48: #{tpu_custom_call.1} parent=11 // pred_fallthru
          _
        // Predicated region
        $region49: #{tpu_custom_call.1} parent=11 // pred_check
          %p382 = pneg %p270
        $region50: #{tpu_custom_call.1} parent=11 // pred_check_branch
          %384 = sbr.rel (%p382) target = $region52
        $region51: #{tpu_custom_call.1} parent=11 // pred_region
          _
        $region52: #{tpu_custom_call.1} parent=11 // pred_fallthru
          _
        // Predicated region
        $region53: #{tpu_custom_call.1} parent=11 // pred_check
          %p385 = pneg %p291
        $region54: #{tpu_custom_call.1} parent=11 // pred_check_branch
          %387 = sbr.rel (%p385) target = $region56
        $region55: #{tpu_custom_call.1} parent=11 // pred_region
          _
        $region56: #{tpu_custom_call.1} parent=11 // pred_fallthru
          _
        // Predicated region
        $region57: #{tpu_custom_call.1} parent=11 // pred_check
          %p388 = pneg %p312
        $region58: #{tpu_custom_call.1} parent=11 // pred_check_branch
          %390 = sbr.rel (%p388) target = $region60
        $region59: #{tpu_custom_call.1} parent=11 // pred_region
          _
        $region60: #{tpu_custom_call.1} parent=11 // pred_fallthru
          _
      $region12: #{tpu_custom_call.1} parent=5 // pred_fallthru
        _
      %p391 = scmp.lt.s32.totalorder %s22, 2
      // Predicated region
      $region61: #{tpu_custom_call.1} parent=5 // pred_check
        %p392 = pneg %p391
      $region62: #{tpu_custom_call.1} parent=5 // pred_check_branch
        %394 = sbr.rel (%p392) target = $region64
      $region63: #{tpu_custom_call.1} parent=5 // pred_region
        // Predicated region
        $region65: #{tpu_custom_call.1} parent=63 // pred_check
          %p395 = pneg %p54
        $region66: #{tpu_custom_call.1} parent=63 // pred_check_branch
          %397 = sbr.rel (%p395) target = $region68
        $region67: #{tpu_custom_call.1} parent=63 // pred_region
          %p398 = scmp.lt.s32.totalorder %s29, 1
          %s399 = scalar_select %p398, %s29, 1
          %s400 = smul.addr %s399, 8
          %s401 = scalar_lea.vmem %s0, %s400
        $region68: #{tpu_custom_call.1} parent=63 // pred_fallthru
          _
      $region64: #{tpu_custom_call.1} parent=5 // pred_fallthru
        _
      %p402 = scmp.le.s32.totalorder 1, %s22
      %p403 = scmp.lt.s32.totalorder %s22, 3
      %p404 = pnand %p402, %p403
      %p405 = pneg %p404
      // Predicated region
      $region69: #{tpu_custom_call.1} parent=5 // pred_check
        _
      $region70: #{tpu_custom_call.1} parent=5 // pred_check_branch
        %407 = sbr.rel (%p404) target = $region72
      $region71: #{tpu_custom_call.1} parent=5 // pred_region
        %s408 = ssub.s32 %s22, 1
        %p409 = scmp.lt.s32.totalorder %s31, 1
        %s410 = scalar_select %p409, %s31, 1
        %s411 = smul.addr %s410, 8
        %s412 = scalar_lea.vmem %s0, %s411
        %p413 = pneg %p60
        %p414 = pneg %p57
        %p415 = pneg %p81
        %p416 = pneg %p78
        %p417 = pneg %p102
        %p418 = pneg %p99
        %p419 = pneg %p123
        %p420 = pneg %p120
        %p421 = pneg %p144
        %p422 = pneg %p141
        %p423 = pneg %p165
        %p424 = pneg %p162
        %p425 = pneg %p186
        %p426 = pneg %p183
        %p427 = pneg %p207
        %p428 = pneg %p204
        %p429 = pneg %p228
        %p430 = pneg %p225
        %p431 = pneg %p249
        %p432 = pneg %p246
        %p433 = pneg %p270
        %p434 = pneg %p267
        %p435 = pneg %p291
        %p436 = pneg %p288
        %p437 = pneg %p312
        %p438 = pneg %p309
        %p439 = pneg %p340
        %p440 = pneg %p337
        %s441 = sand.u32 %s327, 1
        %s442 = scalar_lea.sflag [#allocation6], %s441
        %s443 = sand.u32 %s327, 1
        %s444 = smul.addr %s443, 8
        %s445 = scalar_lea.vmem [#allocation5], %s444
        %p446 = scmp.lt.s32.totalorder %s31, 1
        %s447 = scalar_select %p446, %s31, 1
        %s448 = smul.addr %s447, 8
        %s449 = scalar_lea.vmem %s0, %s448
        %p451 = scmp.eq.s32.totalorder %s32, 0
        // Predicated region
        $region73: #{tpu_custom_call.1} parent=71 // pred_check
          %p452 = pneg %p451
        $region74: #{tpu_custom_call.1} parent=71 // pred_check_branch
          %454 = sbr.rel (%p452) target = $region76
        $region75: #{tpu_custom_call.1} parent=71 // pred_region
          %v455 = vld [vmem:[%s449] sm:$0xff]
          %v456 = vld [vmem:[%s1] sm:$0x1]
          %v457 = vld [vmem:[%s2] sm:$0x1]
          %vm458 = vcmask 261120
          %v459 = vsel %vm458, %v455, 0.0
          %460 = vadd.xlane.f32.xlu0 %v459
          %v461 = vpop.xlane.xlu0 %460
          %v462 = vrcp.pop 32.0
          %v463 = vmul.f32 %v461, %v462
          %v464 = vsub.f32 %v455, %v463
          %v465 = vmul.f32 %v464, %v464
          %v466 = vsel %vm458, %v465, 0.0
          %467 = vadd.xlane.f32.xlu0 %v466
          %v468 = vpop.xlane.xlu0 %467
          %v469 = vmul.f32 %v468, %v462
          %v470 = vadd.f32 %v469, 1e-05
          %v471 = vrsqrt.pop %v470
          %v472 = vmul.f32 %v464, %v471
          %v474 = vlaneseq
          %v475 = vshrl.u32 %v474, 7
          %v476 = vsub.s32 0, %v475
          %v477 = vrot.slane %v456, %v476
          %v479 = vmul.f32 %v472, %v477
          %v481 = vlaneseq
          %v482 = vshrl.u32 %v481, 7
          %v483 = vsub.s32 0, %v482
          %v484 = vrot.slane %v457, %v483
          %v486 = vadd.f32 %v479, %v484
          %v487 = vpack.c.bf16 %v486, %v486
          %v488 = vld [vmem:[%s3] sm:$0xf]
          %v489 = vld [vmem:[%s3 + $0x4] sm:$0xf]
          %v490 = vld [vmem:[%s3 + $0x8] sm:$0xf]
          %v491 = vld [vmem:[%s3 + $0xc] sm:$0xf]
          %v492 = vld [vmem:[%s4] sm:$0x1]
          %v494 = vlaneseq
          %v495 = vshrl.u32 %v494, 7
          %v496 = vsub.s32 0, %v495
          %v497 = vrot.slane %v492, %v496
          %v503 = vunpack.c.l.b16 %v488
          %v504 = vunpack.c.l.b16 %v489
          %v505 = vunpack.c.l.b16 %v490
          %v506 = vunpack.c.l.b16 %v491
          %v507 = vpack.c.b16 %v504, %v503
          %v508 = vpack.c.b16 %v506, %v505
          %v512 = vsel %vm458, %v487, 0
          %514 = vmatprep.subr.bf16.mxu0 0
          %515 = vmatpush1.bf16.msra.mxu0 %v507
          %516 = vmatprep.subr.bf16.mxu0 0
          %517 = vmatpush1.bf16.msra.mxu0 %v508
          %518 = vmatprep.subr.bf16.mxu0 0
          %519 = vmatpush1.bf16.msra.mxu0 0
          %520 = vmatprep.subr.bf16.mxu0 0
          %521 = vmatpush1.bf16.msra.mxu0 0
          %522 = vmatprep.subr.bf16.mxu0 0
          %523 = vmatpush1.bf16.msra.mxu0 0
          %524 = vmatprep.subr.bf16.mxu0 0
          %525 = vmatpush1.bf16.msra.mxu0 0
          %526 = vmatprep.subr.bf16.mxu0 0
          %527 = vmatpush1.bf16.msra.mxu0 0
          %528 = vmatprep.subr.bf16.mxu0 0
          %529 = vmatpush1.bf16.msra.mxu0 0
          %530 = vmatprep.subr.bf16.mxu0 0
          %531 = vmatpush1.bf16.msra.mxu0 0
          %532 = vmatprep.subr.bf16.mxu0 0
          %533 = vmatpush1.bf16.msra.mxu0 0
          %534 = vmatprep.subr.bf16.mxu0 0
          %535 = vmatpush1.bf16.msra.mxu0 0
          %536 = vmatprep.subr.bf16.mxu0 0
          %537 = vmatpush1.bf16.msra.mxu0 0
          %538 = vmatprep.subr.bf16.mxu0 0
          %539 = vmatpush1.bf16.msra.mxu0 0
          %540 = vmatprep.subr.bf16.mxu0 0
          %541 = vmatpush1.bf16.msra.mxu0 0
          %542 = vmatprep.subr.bf16.mxu0 0
          %543 = vmatpush1.bf16.msra.mxu0 0
          %544 = vmatprep.subr.bf16.mxu0 0
          %545 = vmatpush1.bf16.msra.mxu0 0
          %546 = vmatprep.mubr.bf16.mxu0 0
          %547 = vmatmul.mubr.bf16.gmra.mrb[0].mxu0 %v512
          %v548 = vpop.f32.mrb[0].mxu0
          %v549 = vadd.f32 %v497, %v548
          %v550 = vpop.f32.mrb[0].mxu0
          %v551 = vpop.f32.mrb[0].mxu0
          %v552 = vpop.f32.mrb[0].mxu0
          %553 = vdwg.mxu0
          %v554 = vmul.f32 %v549, 0.35355338
          %556 = vrot.lane.b32.xlu0 %v549, 64
          %v557 = vpop.permute.xlu0 %556
          %vm559 = vcmask 64512
          %v560 = vsel %vm559, %v557, 1.0
          %v561 = vpack.c.bf16 %v554, %v554
          %vm562 = vcmask 60416
          %563 = vst.msk [vmem:[#allocation2] sm:$0xf] %vm562, %v561
          %v564 = vpack.c.bf16 %v549, %v549
          %v566 = vunpack.c.l.b16 %v564
          %v567 = vpack.c.b16 %v566, %v566
          %568 = vrot.lane.b32.xlu0 %v567, 96
          %v569 = vpop.permute.xlu0 %568
          %571 = vst.msk [vmem:[#allocation3] sm:$0xf] %vm562, %v569
          %v572 = vpack.c.bf16 %v560, %v560
          %vm573 = vcmask 68608
          %574 = vst.msk [vmem:[#allocation4] sm:$0xf] %vm573, %v572
          %575 = vrot.lane.b32.xlu0 %v549, 56
          %v576 = vpop.permute.xlu0 %575
          %v578 = vsel %vm559, %v576, 1.0
          %v580 = vunpack.c.l.b16 %v561
          %v581 = vpack.c.b16 %v580, %v580
          %582 = vrot.lane.b32.xlu0 %v581, 120
          %v583 = vpop.permute.xlu0 %582
          %s585 = sadd.s32 0, 1
          %s586 = smul.addr %s585, 4
          %s587 = scalar_lea.vmem [#allocation2], %s586
          %588 = vst.msk [vmem:[%s587] sm:$0xf] %vm562, %v583
          %589 = vrot.lane.b32.xlu0 %v567, 88
          %v590 = vpop.permute.xlu0 %589
          %s592 = smul.addr %s585, 4
          %s593 = scalar_lea.vmem [#allocation3], %s592
          %594 = vst.msk [vmem:[%s593] sm:$0xf] %vm562, %v590
          %v595 = vpack.c.bf16 %v578, %v578
          %s596 = smul.addr %s585, 4
          %s597 = scalar_lea.vmem [#allocation4], %s596
          %598 = vst.msk [vmem:[%s597] sm:$0xf] %vm573, %v595
          %599 = vrot.lane.b32.xlu0 %v549, 48
          %v600 = vpop.permute.xlu0 %599
          %v602 = vsel %vm559, %v600, 1.0
          %603 = vrot.lane.b32.xlu0 %v581, 112
          %v604 = vpop.permute.xlu0 %603
          %s606 = sadd.s32 0, 2
          %s607 = smul.addr %s606, 4
          %s608 = scalar_lea.vmem [#allocation2], %s607
          %609 = vst.msk [vmem:[%s608] sm:$0xf] %vm562, %v604
          %610 = vrot.lane.b32.xlu0 %v567, 80
          %v611 = vpop.permute.xlu0 %610
          %s613 = smul.addr %s606, 4
          %s614 = scalar_lea.vmem [#allocation3], %s613
          %615 = vst.msk [vmem:[%s614] sm:$0xf] %vm562, %v611
          %v616 = vpack.c.bf16 %v602, %v602
          %s617 = smul.addr %s606, 4
          %s618 = scalar_lea.vmem [#allocation4], %s617
          %619 = vst.msk [vmem:[%s618] sm:$0xf] %vm573, %v616
          %620 = vrot.lane.b32.xlu0 %v549, 40
          %v621 = vpop.permute.xlu0 %620
          %v623 = vsel %vm559, %v621, 1.0
          %624 = vrot.lane.b32.xlu0 %v581, 104
          %v625 = vpop.permute.xlu0 %624
          %s627 = sadd.s32 0, 3
          %s628 = smul.addr %s627, 4
          %s629 = scalar_lea.vmem [#allocation2], %s628
          %630 = vst.msk [vmem:[%s629] sm:$0xf] %vm562, %v625
          %631 = vrot.lane.b32.xlu0 %v567, 72
          %v632 = vpop.permute.xlu0 %631
          %s634 = smul.addr %s627, 4
          %s635 = scalar_lea.vmem [#allocation3], %s634
          %636 = vst.msk [vmem:[%s635] sm:$0xf] %vm562, %v632
          %v637 = vpack.c.bf16 %v623, %v623
          %s638 = smul.addr %s627, 4
          %s639 = scalar_lea.vmem [#allocation4], %s638
          %640 = vst.msk [vmem:[%s639] sm:$0xf] %vm573, %v637
        $region76: #{tpu_custom_call.1} parent=71 // pred_fallthru
          _
        %s641 = smul.u32 %s32, 8
        %s642 = sshra.s32 %s641, 3
        %s643 = sand.u32 %s641, 7
        %s644 = smul.addr %s642, 4
        %s645 = scalar_lea.vmem [#allocation2], %s644
        %v646 = vld [vmem:[%s645] sm:$0xf]
        %v647 = vld [vmem:[%s645 + $0x4] sm:$0xf]
        %v648 = vld [vmem:[%s645 + $0x8] sm:$0xf]
        %v649 = vld [vmem:[%s645 + $0xc] sm:$0xf]
        %v650 = vld [vmem:[#allocation3] sm:$0xf]
        %v651 = vld [vmem:[#allocation3 + $0x4] sm:$0xf]
        %v652 = vld [vmem:[#allocation3 + $0x8] sm:$0xf]
        %v653 = vld [vmem:[#allocation3 + $0xc] sm:$0xf]
        %v654 = vld [vmem:[#allocation4] sm:$0xf]
        %v655 = vld [vmem:[#allocation4 + $0x4] sm:$0xf]
        %v656 = vld [vmem:[#allocation4 + $0x8] sm:$0xf]
        %v657 = vld [vmem:[#allocation4 + $0xc] sm:$0xf]
        %vm658 = vcmask 64512
        %v660 = vsel %vm658, %v646, 0
        %v663 = vsel %vm658, %v650, 0
        %665 = vmatprep.subr.bf16.mxu0 0
        %666 = vmatpush1.bf16.xpose.msra.mxu0 %v663
        %667 = vmatprep.subr.bf16.mxu0 0
        %668 = vmatpush1.bf16.xpose.msra.mxu0 0
        %669 = vmatprep.subr.bf16.mxu0 0
        %670 = vmatpush1.bf16.xpose.msra.mxu0 0
        %671 = vmatprep.subr.bf16.mxu0 0
        %672 = vmatpush1.bf16.xpose.msra.mxu0 0
        %673 = vmatprep.subr.bf16.mxu0 0
        %674 = vmatpush1.bf16.xpose.msra.mxu0 0
        %675 = vmatprep.subr.bf16.mxu0 0
        %676 = vmatpush1.bf16.xpose.msra.mxu0 0
        %677 = vmatprep.subr.bf16.mxu0 0
        %678 = vmatpush1.bf16.xpose.msra.mxu0 0
        %679 = vmatprep.subr.bf16.mxu0 0
        %680 = vmatpush1.bf16.xpose.msra.mxu0 0
        %681 = vmatprep.subr.bf16.mxu0 0
        %682 = vmatpush1.bf16.xpose.msra.mxu0 0
        %683 = vmatprep.subr.bf16.mxu0 0
        %684 = vmatpush1.bf16.xpose.msra.mxu0 0
        %685 = vmatprep.subr.bf16.mxu0 0
        %686 = vmatpush1.bf16.xpose.msra.mxu0 0
        %687 = vmatprep.subr.bf16.mxu0 0
        %688 = vmatpush1.bf16.xpose.msra.mxu0 0
        %689 = vmatprep.subr.bf16.mxu0 0
        %690 = vmatpush1.bf16.xpose.msra.mxu0 0
        %691 = vmatprep.subr.bf16.mxu0 0
        %692 = vmatpush1.bf16.xpose.msra.mxu0 0
        %693 = vmatprep.subr.bf16.mxu0 0
        %694 = vmatpush1.bf16.xpose.msra.mxu0 0
        %695 = vmatprep.subr.bf16.mxu0 0
        %696 = vmatpush1.bf16.xpose.msra.mxu0 0
        %697 = vmatprep.mubr.bf16.mxu0 0
        %698 = vmatmul.mubr.bf16.gmra.mrb[0].mxu0 %v660
        %v699 = vpop.f32.mrb[0].mxu0
        %v700 = vadd.f32 0.0, %v699
        %v701 = vpop.f32.mrb[0].mxu0
        %v702 = vpop.f32.mrb[0].mxu0
        %v703 = vpop.f32.mrb[0].mxu0
        %704 = vdwg.mxu0
        %v706 = vsel %vm658, %v647, 0
        %v709 = vsel %vm658, %v651, 0
        %711 = vmatprep.subr.bf16.mxu0 0
        %712 = vmatpush1.bf16.xpose.msra.mxu0 %v709
        %713 = vmatprep.subr.bf16.mxu0 0
        %714 = vmatpush1.bf16.xpose.msra.mxu0 0
        %715 = vmatprep.subr.bf16.mxu0 0
        %716 = vmatpush1.bf16.xpose.msra.mxu0 0
        %717 = vmatprep.subr.bf16.mxu0 0
        %718 = vmatpush1.bf16.xpose.msra.mxu0 0
        %719 = vmatprep.subr.bf16.mxu0 0
        %720 = vmatpush1.bf16.xpose.msra.mxu0 0
        %721 = vmatprep.subr.bf16.mxu0 0
        %722 = vmatpush1.bf16.xpose.msra.mxu0 0
        %723 = vmatprep.subr.bf16.mxu0 0
        %724 = vmatpush1.bf16.xpose.msra.mxu0 0
        %725 = vmatprep.subr.bf16.mxu0 0
        %726 = vmatpush1.bf16.xpose.msra.mxu0 0
        %727 = vmatprep.subr.bf16.mxu0 0
        %728 = vmatpush1.bf16.xpose.msra.mxu0 0
        %729 = vmatprep.subr.bf16.mxu0 0
        %730 = vmatpush1.bf16.xpose.msra.mxu0 0
        %731 = vmatprep.subr.bf16.mxu0 0
        %732 = vmatpush1.bf16.xpose.msra.mxu0 0
        %733 = vmatprep.subr.bf16.mxu0 0
        %734 = vmatpush1.bf16.xpose.msra.mxu0 0
        %735 = vmatprep.subr.bf16.mxu0 0
        %736 = vmatpush1.bf16.xpose.msra.mxu0 0
        %737 = vmatprep.subr.bf16.mxu0 0
        %738 = vmatpush1.bf16.xpose.msra.mxu0 0
        %739 = vmatprep.subr.bf16.mxu0 0
        %740 = vmatpush1.bf16.xpose.msra.mxu0 0
        %741 = vmatprep.subr.bf16.mxu0 0
        %742 = vmatpush1.bf16.xpose.msra.mxu0 0
        %743 = vmatprep.mubr.bf16.mxu0 0
        %744 = vmatmul.mubr.bf16.gmra.mrb[0].mxu0 %v706
        %v745 = vpop.f32.mrb[0].mxu0
        %v746 = vadd.f32 0.0, %v745
        %v747 = vpop.f32.mrb[0].mxu0
        %v748 = vpop.f32.mrb[0].mxu0
        %v749 = vpop.f32.mrb[0].mxu0
        %750 = vdwg.mxu0
        %v752 = vsel %vm658, %v648, 0
        %v755 = vsel %vm658, %v652, 0
        %757 = vmatprep.subr.bf16.mxu0 0
        %758 = vmatpush1.bf16.xpose.msra.mxu0 %v755
        %759 = vmatprep.subr.bf16.mxu0 0
        %760 = vmatpush1.bf16.xpose.msra.mxu0 0
        %761 = vmatprep.subr.bf16.mxu0 0
        %762 = vmatpush1.bf16.xpose.msra.mxu0 0
        %763 = vmatprep.subr.bf16.mxu0 0
        %764 = vmatpush1.bf16.xpose.msra.mxu0 0
        %765 = vmatprep.subr.bf16.mxu0 0
        %766 = vmatpush1.bf16.xpose.msra.mxu0 0
        %767 = vmatprep.subr.bf16.mxu0 0
        %768 = vmatpush1.bf16.xpose.msra.mxu0 0
        %769 = vmatprep.subr.bf16.mxu0 0
        %770 = vmatpush1.bf16.xpose.msra.mxu0 0
        %771 = vmatprep.subr.bf16.mxu0 0
        %772 = vmatpush1.bf16.xpose.msra.mxu0 0
        %773 = vmatprep.subr.bf16.mxu0 0
        %774 = vmatpush1.bf16.xpose.msra.mxu0 0
        %775 = vmatprep.subr.bf16.mxu0 0
        %776 = vmatpush1.bf16.xpose.msra.mxu0 0
        %777 = vmatprep.subr.bf16.mxu0 0
        %778 = vmatpush1.bf16.xpose.msra.mxu0 0
        %779 = vmatprep.subr.bf16.mxu0 0
        %780 = vmatpush1.bf16.xpose.msra.mxu0 0
        %781 = vmatprep.subr.bf16.mxu0 0
        %782 = vmatpush1.bf16.xpose.msra.mxu0 0
        %783 = vmatprep.subr.bf16.mxu0 0
        %784 = vmatpush1.bf16.xpose.msra.mxu0 0
        %785 = vmatprep.subr.bf16.mxu0 0
        %786 = vmatpush1.bf16.xpose.msra.mxu0 0
        %787 = vmatprep.subr.bf16.mxu0 0
        %788 = vmatpush1.bf16.xpose.msra.mxu0 0
        %789 = vmatprep.mubr.bf16.mxu0 0
        %790 = vmatmul.mubr.bf16.gmra.mrb[0].mxu0 %v752
        %v791 = vpop.f32.mrb[0].mxu0
        %v792 = vadd.f32 0.0, %v791
        %v793 = vpop.f32.mrb[0].mxu0
        %v794 = vpop.f32.mrb[0].mxu0
        %v795 = vpop.f32.mrb[0].mxu0
        %796 = vdwg.mxu0
        %v798 = vsel %vm658, %v649, 0
        %v801 = vsel %vm658, %v653, 0
        %803 = vmatprep.subr.bf16.mxu0 0
        %804 = vmatpush1.bf16.xpose.msra.mxu0 %v801
        %805 = vmatprep.subr.bf16.mxu0 0
        %806 = vmatpush1.bf16.xpose.msra.mxu0 0
        %807 = vmatprep.subr.bf16.mxu0 0
        %808 = vmatpush1.bf16.xpose.msra.mxu0 0
        %809 = vmatprep.subr.bf16.mxu0 0
        %810 = vmatpush1.bf16.xpose.msra.mxu0 0
        %811 = vmatprep.subr.bf16.mxu0 0
        %812 = vmatpush1.bf16.xpose.msra.mxu0 0
        %813 = vmatprep.subr.bf16.mxu0 0
        %814 = vmatpush1.bf16.xpose.msra.mxu0 0
        %815 = vmatprep.subr.bf16.mxu0 0
        %816 = vmatpush1.bf16.xpose.msra.mxu0 0
        %817 = vmatprep.subr.bf16.mxu0 0
        %818 = vmatpush1.bf16.xpose.msra.mxu0 0
        %819 = vmatprep.subr.bf16.mxu0 0
        %820 = vmatpush1.bf16.xpose.msra.mxu0 0
        %821 = vmatprep.subr.bf16.mxu0 0
        %822 = vmatpush1.bf16.xpose.msra.mxu0 0
        %823 = vmatprep.subr.bf16.mxu0 0
        %824 = vmatpush1.bf16.xpose.msra.mxu0 0
        %825 = vmatprep.subr.bf16.mxu0 0
        %826 = vmatpush1.bf16.xpose.msra.mxu0 0
        %827 = vmatprep.subr.bf16.mxu0 0
        %828 = vmatpush1.bf16.xpose.msra.mxu0 0
        %829 = vmatprep.subr.bf16.mxu0 0
        %830 = vmatpush1.bf16.xpose.msra.mxu0 0
        %831 = vmatprep.subr.bf16.mxu0 0
        %832 = vmatpush1.bf16.xpose.msra.mxu0 0
        %833 = vmatprep.subr.bf16.mxu0 0
        %834 = vmatpush1.bf16.xpose.msra.mxu0 0
        %835 = vmatprep.mubr.bf16.mxu0 0
        %836 = vmatmul.mubr.bf16.gmra.mrb[0].mxu0 %v798
        %v837 = vpop.f32.mrb[0].mxu0
        %v838 = vadd.f32 0.0, %v837
        %v839 = vpop.f32.mrb[0].mxu0
        %v840 = vpop.f32.mrb[0].mxu0
        %v841 = vpop.f32.mrb[0].mxu0
        %842 = vdwg.mxu0
        %v843 = vsel %vm658, %v700, -inf
        %844 = vmax.xlane.f32.xlu0 %v843
        %v845 = vpop.xlane.xlu0 %844
        %v846 = vsel %vm658, %v746, -inf
        %847 = vmax.xlane.f32.xlu0 %v846
        %v848 = vpop.xlane.xlu0 %847
        %v849 = vsel %vm658, %v792, -inf
        %850 = vmax.xlane.f32.xlu0 %v849
        %v851 = vpop.xlane.xlu0 %850
        %v852 = vsel %vm658, %v838, -inf
        %853 = vmax.xlane.f32.xlu0 %v852
        %v854 = vpop.xlane.xlu0 %853
        %v855 = vsub.f32 -inf, %v845
        %v856 = vsub.f32 -inf, %v848
        %v857 = vsub.f32 -inf, %v851
        %v858 = vsub.f32 -inf, %v854
        %v859 = vmul.f32 %v855, 1.442695
        %v860 = vpow.pop %v859
        %v861 = vmul.f32 %v856, 1.442695
        %v862 = vpow.pop %v861
        %v863 = vmul.f32 %v857, 1.442695
        %v864 = vpow.pop %v863
        %v865 = vmul.f32 %v858, 1.442695
        %v866 = vpow.pop %v865
        %v867 = vsub.f32 %v700, %v845
        %v868 = vsub.f32 %v746, %v848
        %v869 = vsub.f32 %v792, %v851
        %v870 = vsub.f32 %v838, %v854
        %v871 = vmul.f32 %v867, 1.442695
        %v872 = vpow.pop %v871
        %v873 = vmul.f32 %v868, 1.442695
        %v874 = vpow.pop %v873
        %v875 = vmul.f32 %v869, 1.442695
        %v876 = vpow.pop %v875
        %v877 = vmul.f32 %v870, 1.442695
        %v878 = vpow.pop %v877
        %v879 = vpack.c.bf16 %v872, %v872
        %v880 = vpack.c.bf16 %v874, %v874
        %v881 = vpack.c.bf16 %v876, %v876
        %v882 = vpack.c.bf16 %v878, %v878
        %v884 = vsel %vm658, %v879, 0
        %vm886 = vcmask 1043456
        %v888 = vsel %vm886, %v654, 0
        %890 = vmatprep.subr.bf16.mxu0 0
        %891 = vmatpush1.bf16.msra.mxu0 %v888
        %892 = vmatprep.subr.bf16.mxu0 0
        %893 = vmatpush1.bf16.msra.mxu0 0
        %894 = vmatprep.subr.bf16.mxu0 0
        %895 = vmatpush1.bf16.msra.mxu0 0
        %896 = vmatprep.subr.bf16.mxu0 0
        %897 = vmatpush1.bf16.msra.mxu0 0
        %898 = vmatprep.subr.bf16.mxu0 0
        %899 = vmatpush1.bf16.msra.mxu0 0
        %900 = vmatprep.subr.bf16.mxu0 0
        %901 = vmatpush1.bf16.msra.mxu0 0
        %902 = vmatprep.subr.bf16.mxu0 0
        %903 = vmatpush1.bf16.msra.mxu0 0
        %904 = vmatprep.subr.bf16.mxu0 0
        %905 = vmatpush1.bf16.msra.mxu0 0
        %906 = vmatprep.subr.bf16.mxu0 0
        %907 = vmatpush1.bf16.msra.mxu0 0
        %908 = vmatprep.subr.bf16.mxu0 0
        %909 = vmatpush1.bf16.msra.mxu0 0
        %910 = vmatprep.subr.bf16.mxu0 0
        %911 = vmatpush1.bf16.msra.mxu0 0
        %912 = vmatprep.subr.bf16.mxu0 0
        %913 = vmatpush1.bf16.msra.mxu0 0
        %914 = vmatprep.subr.bf16.mxu0 0
        %915 = vmatpush1.bf16.msra.mxu0 0
        %916 = vmatprep.subr.bf16.mxu0 0
        %917 = vmatpush1.bf16.msra.mxu0 0
        %918 = vmatprep.subr.bf16.mxu0 0
        %919 = vmatpush1.bf16.msra.mxu0 0
        %920 = vmatprep.subr.bf16.mxu0 0
        %921 = vmatpush1.bf16.msra.mxu0 0
        %922 = vmatprep.mubr.bf16.mxu0 0
        %923 = vmatmul.mubr.bf16.gmra.mrb[0].mxu0 %v884
        %v924 = vpop.f32.mrb[0].mxu0
        %v925 = vadd.f32 0.0, %v924
        %v926 = vpop.f32.mrb[0].mxu0
        %v927 = vpop.f32.mrb[0].mxu0
        %v928 = vpop.f32.mrb[0].mxu0
        %929 = vdwg.mxu0
        %v931 = vsel %vm658, %v880, 0
        %v934 = vsel %vm886, %v655, 0
        %936 = vmatprep.subr.bf16.mxu0 0
        %937 = vmatpush1.bf16.msra.mxu0 %v934
        %938 = vmatprep.subr.bf16.mxu0 0
        %939 = vmatpush1.bf16.msra.mxu0 0
        %940 = vmatprep.subr.bf16.mxu0 0
        %941 = vmatpush1.bf16.msra.mxu0 0
        %942 = vmatprep.subr.bf16.mxu0 0
        %943 = vmatpush1.bf16.msra.mxu0 0
        %944 = vmatprep.subr.bf16.mxu0 0
        %945 = vmatpush1.bf16.msra.mxu0 0
        %946 = vmatprep.subr.bf16.mxu0 0
        %947 = vmatpush1.bf16.msra.mxu0 0
        %948 = vmatprep.subr.bf16.mxu0 0
        %949 = vmatpush1.bf16.msra.mxu0 0
        %950 = vmatprep.subr.bf16.mxu0 0
        %951 = vmatpush1.bf16.msra.mxu0 0
        %952 = vmatprep.subr.bf16.mxu0 0
        %953 = vmatpush1.bf16.msra.mxu0 0
        %954 = vmatprep.subr.bf16.mxu0 0
        %955 = vmatpush1.bf16.msra.mxu0 0
        %956 = vmatprep.subr.bf16.mxu0 0
        %957 = vmatpush1.bf16.msra.mxu0 0
        %958 = vmatprep.subr.bf16.mxu0 0
        %959 = vmatpush1.bf16.msra.mxu0 0
        %960 = vmatprep.subr.bf16.mxu0 0
        %961 = vmatpush1.bf16.msra.mxu0 0
        %962 = vmatprep.subr.bf16.mxu0 0
        %963 = vmatpush1.bf16.msra.mxu0 0
        %964 = vmatprep.subr.bf16.mxu0 0
        %965 = vmatpush1.bf16.msra.mxu0 0
        %966 = vmatprep.subr.bf16.mxu0 0
        %967 = vmatpush1.bf16.msra.mxu0 0
        %968 = vmatprep.mubr.bf16.mxu0 0
        %969 = vmatmul.mubr.bf16.gmra.mrb[0].mxu0 %v931
        %v970 = vpop.f32.mrb[0].mxu0
        %v971 = vadd.f32 0.0, %v970
        %v972 = vpop.f32.mrb[0].mxu0
        %v973 = vpop.f32.mrb[0].mxu0
        %v974 = vpop.f32.mrb[0].mxu0
        %975 = vdwg.mxu0
        %v977 = vsel %vm658, %v881, 0
        %v980 = vsel %vm886, %v656, 0
        %982 = vmatprep.subr.bf16.mxu0 0
        %983 = vmatpush1.bf16.msra.mxu0 %v980
        %984 = vmatprep.subr.bf16.mxu0 0
        %985 = vmatpush1.bf16.msra.mxu0 0
        %986 = vmatprep.subr.bf16.mxu0 0
        %987 = vmatpush1.bf16.msra.mxu0 0
        %988 = vmatprep.subr.bf16.mxu0 0
        %989 = vmatpush1.bf16.msra.mxu0 0
        %990 = vmatprep.subr.bf16.mxu0 0
        %991 = vmatpush1.bf16.msra.mxu0 0
        %992 = vmatprep.subr.bf16.mxu0 0
        %993 = vmatpush1.bf16.msra.mxu0 0
        %994 = vmatprep.subr.bf16.mxu0 0
        %995 = vmatpush1.bf16.msra.mxu0 0
        %996 = vmatprep.subr.bf16.mxu0 0
        %997 = vmatpush1.bf16.msra.mxu0 0
        %998 = vmatprep.subr.bf16.mxu0 0
        %999 = vmatpush1.bf16.msra.mxu0 0
        %1000 = vmatprep.subr.bf16.mxu0 0
        %1001 = vmatpush1.bf16.msra.mxu0 0
        %1002 = vmatprep.subr.bf16.mxu0 0
        %1003 = vmatpush1.bf16.msra.mxu0 0
        %1004 = vmatprep.subr.bf16.mxu0 0
        %1005 = vmatpush1.bf16.msra.mxu0 0
        %1006 = vmatprep.subr.bf16.mxu0 0
        %1007 = vmatpush1.bf16.msra.mxu0 0
        %1008 = vmatprep.subr.bf16.mxu0 0
        %1009 = vmatpush1.bf16.msra.mxu0 0
        %1010 = vmatprep.subr.bf16.mxu0 0
        %1011 = vmatpush1.bf16.msra.mxu0 0
        %1012 = vmatprep.subr.bf16.mxu0 0
        %1013 = vmatpush1.bf16.msra.mxu0 0
        %1014 = vmatprep.mubr.bf16.mxu0 0
        %1015 = vmatmul.mubr.bf16.gmra.mrb[0].mxu0 %v977
        %v1016 = vpop.f32.mrb[0].mxu0
        %v1017 = vadd.f32 0.0, %v1016
        %v1018 = vpop.f32.mrb[0].mxu0
        %v1019 = vpop.f32.mrb[0].mxu0
        %v1020 = vpop.f32.mrb[0].mxu0
        %1021 = vdwg.mxu0
        %v1023 = vsel %vm658, %v882, 0
        %v1026 = vsel %vm886, %v657, 0
        %1028 = vmatprep.subr.bf16.mxu0 0
        %1029 = vmatpush1.bf16.msra.mxu0 %v1026
        %1030 = vmatprep.subr.bf16.mxu0 0
        %1031 = vmatpush1.bf16.msra.mxu0 0
        %1032 = vmatprep.subr.bf16.mxu0 0
        %1033 = vmatpush1.bf16.msra.mxu0 0
        %1034 = vmatprep.subr.bf16.mxu0 0
        %1035 = vmatpush1.bf16.msra.mxu0 0
        %1036 = vmatprep.subr.bf16.mxu0 0
        %1037 = vmatpush1.bf16.msra.mxu0 0
        %1038 = vmatprep.subr.bf16.mxu0 0
        %1039 = vmatpush1.bf16.msra.mxu0 0
        %1040 = vmatprep.subr.bf16.mxu0 0
        %1041 = vmatpush1.bf16.msra.mxu0 0
        %1042 = vmatprep.subr.bf16.mxu0 0
        %1043 = vmatpush1.bf16.msra.mxu0 0
        %1044 = vmatprep.subr.bf16.mxu0 0
        %1045 = vmatpush1.bf16.msra.mxu0 0
        %1046 = vmatprep.subr.bf16.mxu0 0
        %1047 = vmatpush1.bf16.msra.mxu0 0
        %1048 = vmatprep.subr.bf16.mxu0 0
        %1049 = vmatpush1.bf16.msra.mxu0 0
        %1050 = vmatprep.subr.bf16.mxu0 0
        %1051 = vmatpush1.bf16.msra.mxu0 0
        %1052 = vmatprep.subr.bf16.mxu0 0
        %1053 = vmatpush1.bf16.msra.mxu0 0
        %1054 = vmatprep.subr.bf16.mxu0 0
        %1055 = vmatpush1.bf16.msra.mxu0 0
        %1056 = vmatprep.subr.bf16.mxu0 0
        %1057 = vmatpush1.bf16.msra.mxu0 0
        %1058 = vmatprep.subr.bf16.mxu0 0
        %1059 = vmatpush1.bf16.msra.mxu0 0
        %1060 = vmatprep.mubr.bf16.mxu0 0
        %1061 = vmatmul.mubr.bf16.gmra.mrb[0].mxu0 %v1023
        %v1062 = vpop.f32.mrb[0].mxu0
        %v1063 = vadd.f32 0.0, %v1062
        %v1064 = vpop.f32.mrb[0].mxu0
        %v1065 = vpop.f32.mrb[0].mxu0
        %v1066 = vpop.f32.mrb[0].mxu0
        %1067 = vdwg.mxu0
        %v1068 = vmul.f32 %v860, 0.0
        %v1069 = vmul.f32 %v862, 0.0
        %v1070 = vmul.f32 %v864, 0.0
        %v1071 = vmul.f32 %v866, 0.0
        %v1072 = vadd.f32 %v1068, %v925
        %v1073 = vadd.f32 %v1069, %v971
        %v1074 = vadd.f32 %v1070, %v1017
        %v1075 = vadd.f32 %v1071, %v1063
        %v1076 = vrcp.pop %v1072
        %v1077 = vrcp.pop %v1073
        %v1078 = vrcp.pop %v1074
        %v1079 = vrcp.pop %v1075
        %s1080 = scalar_lea.vmem %s449, %s641
        %v1081 = vld [vmem:[%s1080] sm:$0xff]
        %1083 = vset.pattern.permute.xlu0 8
        %1084 = vperm.xlu0 %1083, %v1076
        %v1085 = vpop.permute.xlu0 %1084
        %v1087 = vmul.f32 %v1072, %v1085
        %v1088 = vpack.c.bf16 %v1087, %v1087
        %v1089 = vld [vmem:[%s5] sm:$0xf]
        %1091 = vset.pattern.permute.xlu0 8
        %1092 = vperm.xlu0 %1091, %v1077
        %v1093 = vpop.permute.xlu0 %1092
        %v1095 = vmul.f32 %v1073, %v1093
        %v1096 = vpack.c.bf16 %v1095, %v1095
        %v1097 = vld [vmem:[%s5 + $0x4] sm:$0xf]
        %v1099 = vsel %vm658, %v1096, 0
        %v1102 = vsel %vm886, %v1097, 0
        %1104 = vmatprep.subr.bf16.mxu0 0
        %1105 = vmatpush1.bf16.msra.mxu0 %v1102
        %1106 = vmatprep.subr.bf16.mxu0 0
        %1107 = vmatpush1.bf16.msra.mxu0 0
        %1108 = vmatprep.subr.bf16.mxu0 0
        %1109 = vmatpush1.bf16.msra.mxu0 0
        %1110 = vmatprep.subr.bf16.mxu0 0
        %1111 = vmatpush1.bf16.msra.mxu0 0
        %1112 = vmatprep.subr.bf16.mxu0 0
        %1113 = vmatpush1.bf16.msra.mxu0 0
        %1114 = vmatprep.subr.bf16.mxu0 0
        %1115 = vmatpush1.bf16.msra.mxu0 0
        %1116 = vmatprep.subr.bf16.mxu0 0
        %1117 = vmatpush1.bf16.msra.mxu0 0
        %1118 = vmatprep.subr.bf16.mxu0 0
        %1119 = vmatpush1.bf16.msra.mxu0 0
        %1120 = vmatprep.subr.bf16.mxu0 0
        %1121 = vmatpush1.bf16.msra.mxu0 0
        %1122 = vmatprep.subr.bf16.mxu0 0
        %1123 = vmatpush1.bf16.msra.mxu0 0
        %1124 = vmatprep.subr.bf16.mxu0 0
        %1125 = vmatpush1.bf16.msra.mxu0 0
        %1126 = vmatprep.subr.bf16.mxu0 0
        %1127 = vmatpush1.bf16.msra.mxu0 0
        %1128 = vmatprep.subr.bf16.mxu0 0
        %1129 = vmatpush1.bf16.msra.mxu0 0
        %1130 = vmatprep.subr.bf16.mxu0 0
        %1131 = vmatpush1.bf16.msra.mxu0 0
        %1132 = vmatprep.subr.bf16.mxu0 0
        %1133 = vmatpush1.bf16.msra.mxu0 0
        %1134 = vmatprep.subr.bf16.mxu0 0
        %1135 = vmatpush1.bf16.msra.mxu0 0
        %1136 = vmatprep.mubr.bf16.mxu0 0
        %1137 = vmatmul.mubr.bf16.gmra.mrb[0].mxu0 %v1099
        %v1138 = vpop.f32.mrb[0].mxu0
        %v1139 = vadd.f32 0.0, %v1138
        %v1140 = vpop.f32.mrb[0].mxu0
        %v1141 = vpop.f32.mrb[0].mxu0
        %v1142 = vpop.f32.mrb[0].mxu0
        %1143 = vdwg.mxu0
        %v1145 = vsel %vm658, %v1088, 0
        %v1148 = vsel %vm886, %v1089, 0
        %1150 = vmatprep.subr.bf16.mxu0 0
        %1151 = vmatpush1.bf16.msra.mxu0 %v1148
        %1152 = vmatprep.subr.bf16.mxu0 0
        %1153 = vmatpush1.bf16.msra.mxu0 0
        %1154 = vmatprep.subr.bf16.mxu0 0
        %1155 = vmatpush1.bf16.msra.mxu0 0
        %1156 = vmatprep.subr.bf16.mxu0 0
        %1157 = vmatpush1.bf16.msra.mxu0 0
        %1158 = vmatprep.subr.bf16.mxu0 0
        %1159 = vmatpush1.bf16.msra.mxu0 0
        %1160 = vmatprep.subr.bf16.mxu0 0
        %1161 = vmatpush1.bf16.msra.mxu0 0
        %1162 = vmatprep.subr.bf16.mxu0 0
        %1163 = vmatpush1.bf16.msra.mxu0 0
        %1164 = vmatprep.subr.bf16.mxu0 0
        %1165 = vmatpush1.bf16.msra.mxu0 0
        %1166 = vmatprep.subr.bf16.mxu0 0
        %1167 = vmatpush1.bf16.msra.mxu0 0
        %1168 = vmatprep.subr.bf16.mxu0 0
        %1169 = vmatpush1.bf16.msra.mxu0 0
        %1170 = vmatprep.subr.bf16.mxu0 0
        %1171 = vmatpush1.bf16.msra.mxu0 0
        %1172 = vmatprep.subr.bf16.mxu0 0
        %1173 = vmatpush1.bf16.msra.mxu0 0
        %1174 = vmatprep.subr.bf16.mxu0 0
        %1175 = vmatpush1.bf16.msra.mxu0 0
        %1176 = vmatprep.subr.bf16.mxu0 0
        %1177 = vmatpush1.bf16.msra.mxu0 0
        %1178 = vmatprep.subr.bf16.mxu0 0
        %1179 = vmatpush1.bf16.msra.mxu0 0
        %1180 = vmatprep.subr.bf16.mxu0 0
        %1181 = vmatpush1.bf16.msra.mxu0 0
        %1182 = vmatprep.mubr.bf16.mxu0 0
        %1183 = vmatmul.mubr.bf16.gmra.mrb[0].mxu0 %v1145
        %v1184 = vpop.f32.mrb[0].mxu0
        %v1185 = vadd.f32 %v1139, %v1184
        %v1186 = vpop.f32.mrb[0].mxu0
        %v1187 = vpop.f32.mrb[0].mxu0
        %v1188 = vpop.f32.mrb[0].mxu0
        %1189 = vdwg.mxu0
        %1191 = vset.pattern.permute.xlu0 8
        %1192 = vperm.xlu0 %1191, %v1078
        %v1193 = vpop.permute.xlu0 %1192
        %v1195 = vmul.f32 %v1074, %v1193
        %v1196 = vpack.c.bf16 %v1195, %v1195
        %v1197 = vld [vmem:[%s5 + $0x8] sm:$0xf]
        %v1199 = vsel %vm658, %v1196, 0
        %v1202 = vsel %vm886, %v1197, 0
        %1204 = vmatprep.subr.bf16.mxu0 0
        %1205 = vmatpush1.bf16.msra.mxu0 %v1202
        %1206 = vmatprep.subr.bf16.mxu0 0
        %1207 = vmatpush1.bf16.msra.mxu0 0
        %1208 = vmatprep.subr.bf16.mxu0 0
        %1209 = vmatpush1.bf16.msra.mxu0 0
        %1210 = vmatprep.subr.bf16.mxu0 0
        %1211 = vmatpush1.bf16.msra.mxu0 0
        %1212 = vmatprep.subr.bf16.mxu0 0
        %1213 = vmatpush1.bf16.msra.mxu0 0
        %1214 = vmatprep.subr.bf16.mxu0 0
        %1215 = vmatpush1.bf16.msra.mxu0 0
        %1216 = vmatprep.subr.bf16.mxu0 0
        %1217 = vmatpush1.bf16.msra.mxu0 0
        %1218 = vmatprep.subr.bf16.mxu0 0
        %1219 = vmatpush1.bf16.msra.mxu0 0
        %1220 = vmatprep.subr.bf16.mxu0 0
        %1221 = vmatpush1.bf16.msra.mxu0 0
        %1222 = vmatprep.subr.bf16.mxu0 0
        %1223 = vmatpush1.bf16.msra.mxu0 0
        %1224 = vmatprep.subr.bf16.mxu0 0
        %1225 = vmatpush1.bf16.msra.mxu0 0
        %1226 = vmatprep.subr.bf16.mxu0 0
        %1227 = vmatpush1.bf16.msra.mxu0 0
        %1228 = vmatprep.subr.bf16.mxu0 0
        %1229 = vmatpush1.bf16.msra.mxu0 0
        %1230 = vmatprep.subr.bf16.mxu0 0
        %1231 = vmatpush1.bf16.msra.mxu0 0
        %1232 = vmatprep.subr.bf16.mxu0 0
        %1233 = vmatpush1.bf16.msra.mxu0 0
        %1234 = vmatprep.subr.bf16.mxu0 0
        %1235 = vmatpush1.bf16.msra.mxu0 0
        %1236 = vmatprep.mubr.bf16.mxu0 0
        %1237 = vmatmul.mubr.bf16.gmra.mrb[0].mxu0 %v1199
        %v1238 = vpop.f32.mrb[0].mxu0
        %v1239 = vadd.f32 0.0, %v1238
        %v1240 = vpop.f32.mrb[0].mxu0
        %v1241 = vpop.f32.mrb[0].mxu0
        %v1242 = vpop.f32.mrb[0].mxu0
        %1243 = vdwg.mxu0
        %v1244 = vadd.f32 %v1185, %v1239
        %1246 = vset.pattern.permute.xlu0 8
        %1247 = vperm.xlu0 %1246, %v1079
        %v1248 = vpop.permute.xlu0 %1247
        %v1250 = vmul.f32 %v1075, %v1248
        %v1251 = vpack.c.bf16 %v1250, %v1250
        %v1252 = vld [vmem:[%s5 + $0xc] sm:$0xf]
        %v1254 = vsel %vm658, %v1251, 0
        %v1257 = vsel %vm886, %v1252, 0
        %1259 = vmatprep.subr.bf16.mxu0 0
        %1260 = vmatpush1.bf16.msra.mxu0 %v1257
        %1261 = vmatprep.subr.bf16.mxu0 0
        %1262 = vmatpush1.bf16.msra.mxu0 0
        %1263 = vmatprep.subr.bf16.mxu0 0
        %1264 = vmatpush1.bf16.msra.mxu0 0
        %1265 = vmatprep.subr.bf16.mxu0 0
        %1266 = vmatpush1.bf16.msra.mxu0 0
        %1267 = vmatprep.subr.bf16.mxu0 0
        %1268 = vmatpush1.bf16.msra.mxu0 0
        %1269 = vmatprep.subr.bf16.mxu0 0
        %1270 = vmatpush1.bf16.msra.mxu0 0
        %1271 = vmatprep.subr.bf16.mxu0 0
        %1272 = vmatpush1.bf16.msra.mxu0 0
        %1273 = vmatprep.subr.bf16.mxu0 0
        %1274 = vmatpush1.bf16.msra.mxu0 0
        %1275 = vmatprep.subr.bf16.mxu0 0
        %1276 = vmatpush1.bf16.msra.mxu0 0
        %1277 = vmatprep.subr.bf16.mxu0 0
        %1278 = vmatpush1.bf16.msra.mxu0 0
        %1279 = vmatprep.subr.bf16.mxu0 0
        %1280 = vmatpush1.bf16.msra.mxu0 0
        %1281 = vmatprep.subr.bf16.mxu0 0
        %1282 = vmatpush1.bf16.msra.mxu0 0
        %1283 = vmatprep.subr.bf16.mxu0 0
        %1284 = vmatpush1.bf16.msra.mxu0 0
        %1285 = vmatprep.subr.bf16.mxu0 0
        %1286 = vmatpush1.bf16.msra.mxu0 0
        %1287 = vmatprep.subr.bf16.mxu0 0
        %1288 = vmatpush1.bf16.msra.mxu0 0
        %1289 = vmatprep.subr.bf16.mxu0 0
        %1290 = vmatpush1.bf16.msra.mxu0 0
        %1291 = vmatprep.mubr.bf16.mxu0 0
        %1292 = vmatmul.mubr.bf16.gmra.mrb[0].mxu0 %v1254
        %v1293 = vpop.f32.mrb[0].mxu0
        %v1294 = vadd.f32 0.0, %v1293
        %v1295 = vpop.f32.mrb[0].mxu0
        %v1296 = vpop.f32.mrb[0].mxu0
        %v1297 = vpop.f32.mrb[0].mxu0
        %1298 = vdwg.mxu0
        %v1299 = vadd.f32 %v1244, %v1294
        %v1300 = vld [vmem:[%s6] sm:$0x1]
        %v1302 = vlaneseq
        %v1303 = vshrl.u32 %v1302, 7
        %v1304 = vsub.s32 0, %v1303
        %v1305 = vrot.slane %v1300, %v1304
        %v1307 = vadd.f32 %v1299, %v1305
        %v1308 = vadd.f32 %v1081, %v1307
        %v1309 = vld [vmem:[%s7] sm:$0x1]
        %v1310 = vld [vmem:[%s8] sm:$0x1]
        %vm1311 = vcmask 261120
        %v1312 = vsel %vm1311, %v1308, 0.0
        %1313 = vadd.xlane.f32.xlu0 %v1312
        %v1314 = vpop.xlane.xlu0 %1313
        %v1315 = vrcp.pop 32.0
        %v1316 = vmul.f32 %v1314, %v1315
        %v1317 = vsub.f32 %v1308, %v1316
        %v1318 = vmul.f32 %v1317, %v1317
        %v1319 = vsel %vm1311, %v1318, 0.0
        %1320 = vadd.xlane.f32.xlu0 %v1319
        %v1321 = vpop.xlane.xlu0 %1320
        %v1322 = vmul.f32 %v1321, %v1315
        %v1323 = vadd.f32 %v1322, 1e-05
        %v1324 = vrsqrt.pop %v1323
        %v1325 = vmul.f32 %v1317, %v1324
        %v1327 = vlaneseq
        %v1328 = vshrl.u32 %v1327, 7
        %v1329 = vsub.s32 0, %v1328
        %v1330 = vrot.slane %v1309, %v1329
        %v1332 = vmul.f32 %v1325, %v1330
        %v1334 = vlaneseq
        %v1335 = vshrl.u32 %v1334, 7
        %v1336 = vsub.s32 0, %v1335
        %v1337 = vrot.slane %v1310, %v1336
        %v1339 = vadd.f32 %v1332, %v1337
        %v1340 = vpack.c.bf16 %v1339, %v1339
        %v1341 = vld [vmem:[%s9] sm:$0xf]
        %v1342 = vld [vmem:[%s9 + $0x4] sm:$0xf]
        %v1343 = vld [vmem:[%s9 + $0x8] sm:$0xf]
        %v1344 = vld [vmem:[%s9 + $0xc] sm:$0xf]
        %v1345 = vld [vmem:[%s10] sm:$0x1]
        %v1347 = vlaneseq
        %v1348 = vshrl.u32 %v1347, 7
        %v1349 = vsub.s32 0, %v1348
        %v1350 = vrot.slane %v1345, %v1349
        %v1356 = vunpack.c.l.b16 %v1341
        %v1357 = vunpack.c.l.b16 %v1342
        %v1358 = vunpack.c.l.b16 %v1343
        %v1359 = vunpack.c.l.b16 %v1344
        %v1360 = vpack.c.b16 %v1357, %v1356
        %v1361 = vpack.c.b16 %v1359, %v1358
        %v1365 = vsel %vm1311, %v1340, 0
        %1367 = vmatprep.subr.bf16.mxu0 0
        %1368 = vmatpush1.bf16.msra.mxu0 %v1360
        %1369 = vmatprep.subr.bf16.mxu0 0
        %1370 = vmatpush1.bf16.msra.mxu0 %v1361
        %1371 = vmatprep.subr.bf16.mxu0 0
        %1372 = vmatpush1.bf16.msra.mxu0 0
        %1373 = vmatprep.subr.bf16.mxu0 0
        %1374 = vmatpush1.bf16.msra.mxu0 0
        %1375 = vmatprep.subr.bf16.mxu0 0
        %1376 = vmatpush1.bf16.msra.mxu0 0
        %1377 = vmatprep.subr.bf16.mxu0 0
        %1378 = vmatpush1.bf16.msra.mxu0 0
        %1379 = vmatprep.subr.bf16.mxu0 0
        %1380 = vmatpush1.bf16.msra.mxu0 0
        %1381 = vmatprep.subr.bf16.mxu0 0
        %1382 = vmatpush1.bf16.msra.mxu0 0
        %1383 = vmatprep.subr.bf16.mxu0 0
        %1384 = vmatpush1.bf16.msra.mxu0 0
        %1385 = vmatprep.subr.bf16.mxu0 0
        %1386 = vmatpush1.bf16.msra.mxu0 0
        %1387 = vmatprep.subr.bf16.mxu0 0
        %1388 = vmatpush1.bf16.msra.mxu0 0
        %1389 = vmatprep.subr.bf16.mxu0 0
        %1390 = vmatpush1.bf16.msra.mxu0 0
        %1391 = vmatprep.subr.bf16.mxu0 0
        %1392 = vmatpush1.bf16.msra.mxu0 0
        %1393 = vmatprep.subr.bf16.mxu0 0
        %1394 = vmatpush1.bf16.msra.mxu0 0
        %1395 = vmatprep.subr.bf16.mxu0 0
        %1396 = vmatpush1.bf16.msra.mxu0 0
        %1397 = vmatprep.subr.bf16.mxu0 0
        %1398 = vmatpush1.bf16.msra.mxu0 0
        %1399 = vmatprep.mubr.bf16.mxu0 0
        %1400 = vmatmul.mubr.bf16.gmra.mrb[0].mxu0 %v1365
        %v1401 = vpop.f32.mrb[0].mxu0
        %v1402 = vadd.f32 %v1350, %v1401
        %v1403 = vpop.f32.mrb[0].mxu0
        %v1404 = vpop.f32.mrb[0].mxu0
        %v1405 = vpop.f32.mrb[0].mxu0
        %1406 = vdwg.mxu0
        %v1407 = vmax.f32 %v1402, 0.0
        %v1408 = vpack.c.bf16 %v1407, %v1407
        %v1409 = vld [vmem:[%s11] sm:$0xf]
        %v1410 = vld [vmem:[%s11 + $0x4] sm:$0xf]
        %v1411 = vld [vmem:[%s11 + $0x8] sm:$0xf]
        %v1412 = vld [vmem:[%s11 + $0xc] sm:$0xf]
        %v1413 = vld [vmem:[%s11 + $0x10] sm:$0xf]
        %v1414 = vld [vmem:[%s11 + $0x14] sm:$0xf]
        %v1415 = vld [vmem:[%s11 + $0x18] sm:$0xf]
        %v1416 = vld [vmem:[%s11 + $0x1c] sm:$0xf]
        %v1417 = vld [vmem:[%s11 + $0x20] sm:$0xf]
        %v1418 = vld [vmem:[%s11 + $0x24] sm:$0xf]
        %v1419 = vld [vmem:[%s11 + $0x28] sm:$0xf]
        %v1420 = vld [vmem:[%s11 + $0x2c] sm:$0xf]
        %v1421 = vld [vmem:[%s11 + $0x30] sm:$0xf]
        %v1422 = vld [vmem:[%s11 + $0x34] sm:$0xf]
        %v1423 = vld [vmem:[%s11 + $0x38] sm:$0xf]
        %v1424 = vld [vmem:[%s11 + $0x3c] sm:$0xf]
        %v1425 = vld [vmem:[%s12] sm:$0x1]
        %v1427 = vlaneseq
        %v1428 = vshrl.u32 %v1427, 7
        %v1429 = vsub.s32 0, %v1428
        %v1430 = vrot.slane %v1425, %v1429
        %v1448 = vunpack.c.l.b16 %v1409
        %v1449 = vunpack.c.l.b16 %v1410
        %v1450 = vunpack.c.l.b16 %v1411
        %v1451 = vunpack.c.l.b16 %v1412
        %v1452 = vunpack.c.l.b16 %v1413
        %v1453 = vunpack.c.l.b16 %v1414
        %v1454 = vunpack.c.l.b16 %v1415
        %v1455 = vunpack.c.l.b16 %v1416
        %v1456 = vunpack.c.l.b16 %v1417
        %v1457 = vunpack.c.l.b16 %v1418
        %v1458 = vunpack.c.l.b16 %v1419
        %v1459 = vunpack.c.l.b16 %v1420
        %v1460 = vunpack.c.l.b16 %v1421
        %v1461 = vunpack.c.l.b16 %v1422
        %v1462 = vunpack.c.l.b16 %v1423
        %v1463 = vunpack.c.l.b16 %v1424
        %v1464 = vpack.c.b16 %v1449, %v1448
        %v1465 = vpack.c.b16 %v1451, %v1450
        %v1466 = vpack.c.b16 %v1453, %v1452
        %v1467 = vpack.c.b16 %v1455, %v1454
        %v1468 = vpack.c.b16 %v1457, %v1456
        %v1469 = vpack.c.b16 %v1459, %v1458
        %v1470 = vpack.c.b16 %v1461, %v1460
        %v1471 = vpack.c.b16 %v1463, %v1462
        %1480 = vmatprep.subr.bf16.mxu0 0
        %1481 = vmatpush1.bf16.msra.mxu0 %v1464
        %1482 = vmatprep.subr.bf16.mxu0 0
        %1483 = vmatpush1.bf16.msra.mxu0 %v1465
        %1484 = vmatprep.subr.bf16.mxu0 0
        %1485 = vmatpush1.bf16.msra.mxu0 %v1466
        %1486 = vmatprep.subr.bf16.mxu0 0
        %1487 = vmatpush1.bf16.msra.mxu0 %v1467
        %1488 = vmatprep.subr.bf16.mxu0 0
        %1489 = vmatpush1.bf16.msra.mxu0 %v1468
        %1490 = vmatprep.subr.bf16.mxu0 0
        %1491 = vmatpush1.bf16.msra.mxu0 %v1469
        %1492 = vmatprep.subr.bf16.mxu0 0
        %1493 = vmatpush1.bf16.msra.mxu0 %v1470
        %1494 = vmatprep.subr.bf16.mxu0 0
        %1495 = vmatpush1.bf16.msra.mxu0 %v1471
        %1496 = vmatprep.subr.bf16.mxu0 0
        %1497 = vmatpush1.bf16.msra.mxu0 0
        %1498 = vmatprep.subr.bf16.mxu0 0
        %1499 = vmatpush1.bf16.msra.mxu0 0
        %1500 = vmatprep.subr.bf16.mxu0 0
        %1501 = vmatpush1.bf16.msra.mxu0 0
        %1502 = vmatprep.subr.bf16.mxu0 0
        %1503 = vmatpush1.bf16.msra.mxu0 0
        %1504 = vmatprep.subr.bf16.mxu0 0
        %1505 = vmatpush1.bf16.msra.mxu0 0
        %1506 = vmatprep.subr.bf16.mxu0 0
        %1507 = vmatpush1.bf16.msra.mxu0 0
        %1508 = vmatprep.subr.bf16.mxu0 0
        %1509 = vmatpush1.bf16.msra.mxu0 0
        %1510 = vmatprep.subr.bf16.mxu0 0
        %1511 = vmatpush1.bf16.msra.mxu0 0
        %1512 = vmatprep.mubr.bf16.mxu0 0
        %1513 = vmatmul.mubr.bf16.gmra.mrb[0].mxu0 %v1408
        %v1514 = vpop.f32.mrb[0].mxu0
        %v1515 = vadd.f32 %v1430, %v1514
        %v1516 = vpop.f32.mrb[0].mxu0
        %v1517 = vpop.f32.mrb[0].mxu0
        %v1518 = vpop.f32.mrb[0].mxu0
        %1519 = vdwg.mxu0
        %v1520 = vadd.f32 %v1081, %v1515
        %1521 = vst.msk [vmem:[%s445] sm:$0xff] %vm1311, %v1520
        %s1522 = sand.u32 %s327, 1
        %s1523 = scalar_lea.sflag [#allocation6], %s1522
        %s1524 = sand.u32 %s327, 1
        %s1525 = smul.addr %s1524, 8
        %s1526 = scalar_lea.vmem [#allocation5], %s1525
        // Predicated region
        $region77: #{tpu_custom_call.1} parent=71 // pred_check
          %p1527 = pneg %p337
        $region78: #{tpu_custom_call.1} parent=71 // pred_check_branch
          %1529 = sbr.rel (%p1527) target = $region80
        $region79: #{tpu_custom_call.1} parent=71 // pred_region
          %s1531 = ssub.s32 128, 128
          %1532 = vsyncadd %s1523, %s1531
          %s1533 = sadd.s32 %s32, %s31
          %s1534 = smul.addr %s1533, 128
          %s1535 = scalar_lea.hbm %s13, %s1534
          %s1537 = sshll.u32 %s1526, 4
          %s1538 = int_to_ptr.vmem [resolvable:$true] %s1537
          %1540 = dma.vmem_to_hbm [thread:$0]  %s1538, 128, %s1535, %s1523
        $region80: #{tpu_custom_call.1} parent=71 // pred_fallthru
          _
      $region72: #{tpu_custom_call.1} parent=5 // pred_fallthru
        _
      %p1541 = scmp.le.s32.totalorder 2, %s22
      // Predicated region
      $region81: #{tpu_custom_call.1} parent=5 // pred_check
        %p1542 = pneg %p1541
      $region82: #{tpu_custom_call.1} parent=5 // pred_check_branch
        %1544 = sbr.rel (%p1542) target = $region84
      $region83: #{tpu_custom_call.1} parent=5 // pred_region
        %s1545 = ssub.s32 %s22, 2
        // Predicated region
        $region85: #{tpu_custom_call.1} parent=83 // pred_check
          %p1546 = pneg %p343
        $region86: #{tpu_custom_call.1} parent=83 // pred_check_branch
          %1548 = sbr.rel (%p1546) target = $region88
        $region87: #{tpu_custom_call.1} parent=83 // pred_region
          %s1549 = sand.u32 %s328, 1
          %s1550 = scalar_lea.sflag [#allocation6], %s1549
          %s1551 = sand.u32 %s328, 1
          %s1552 = smul.addr %s1551, 8
          %s1553 = scalar_lea.vmem [#allocation5], %s1552
          %1554 = dma.done %s1550, 128
        $region88: #{tpu_custom_call.1} parent=83 // pred_fallthru
          _
      $region84: #{tpu_custom_call.1} parent=5 // pred_fallthru
        _
    $region6: #{tpu_custom_call.1} parent=1 // loop_footer
      %s26 = sadd.s32 1, %s22
    $region7: #{tpu_custom_call.1} parent=1 // loop_footer_branch
      %21 = sbr.rel target = $region3
    $region8: #{tpu_custom_call.1} parent=1 // loop_exit
      _
    %1555 = vsyncpa [#allocation6], 1
    %s1556 = scalar_lea.sflag [#allocation6], 1
    %1557 = vsyncpa %s1556, 1

</llo_original>
